<compile_context>
chip_gen: v5e
topology: v5e:2x2
jax: 0.10.0
libtpu: 0.0.40
codegen_flags: <defaults>
</compile_context>

<pallas_src>
import functools

import jax
import jax.numpy as jnp
from jax import lax
from jax.experimental import pallas as pl
from jax.experimental.pallas import tpu as pltpu

_COMPUTE_DTYPE = jnp.bfloat16   # MXU operand dtype (f32 accumulation)


def _lstm_chunk_kernel(emb_ref, w_ih_ref, w_hh_ref, b_ref, h0_ref, c0_ref,
                       hid_ref, hn_ref, cn_ref,
                       h_scr, c_scr, x_scr, ih_scr,
                       *, seq_len, chunk_t, num_layers, batch_p, hidden,
                       gates_p, mask_tail, unroll):
    """One sequence chunk of the stacked-LSTM recurrence (all layers).

    emb_ref   : (chunk_t*Bp, Hp)  bf16   embedded inputs for this chunk
    w_ih_ref  : (L, Hp, G)        bf16   packed-gate input weights (resident)
    w_hh_ref  : (L, Hp, G)        bf16   packed-gate recurrent weights (resident)
    b_ref     : (L, 1, G)         f32    b_ih + b_hh, packed-gate layout
    h0/c0_ref : (L, Bp, Hp)       f32    initial states (used at chunk 0 only)
    hid_ref   : (chunk_t*Bp, Hp)  bf16   last-layer hidden states (to HBM)
    hn/cn_ref : (L, Bp, Hp)       f32    final states (VMEM-resident outputs)
    h_scr/c_scr : (L, Bp, Hp)     f32    carried state across grid steps
    x_scr     : (chunk_t*Bp, Hp)  bf16   per-layer activations within the chunk
    ih_scr    : (chunk_t*Bp, G)   f32    hoisted input projection, current layer

    Packed gate layout: the 4 gates of a step live at lanes [k*H,(k+1)*H)
    (k = i,f,g,o order, as in torch) inside one 128-lane block.  Weight rows
    >= H are zero so the garbage lanes [H, 128) of h/c never reach real lanes;
    garbage values stay bounded (products/sums of sigmoids and tanhs).
    """
    B, H, G = batch_p, hidden, gates_p
    chunk = pl.program_id(0)

    # Load (h, c) for all layers into the carried VMEM scratch on chunk 0.
    @pl.when(chunk == 0)
    def _():
        h_scr[...] = h0_ref[...]
        c_scr[...] = c0_ref[...]

    lane = lax.broadcasted_iota(jnp.int32, (B, G), 1)
    g_lanes = (lane >= 2 * H) & (lane < 3 * H)       # tanh (cell-gate) lanes

    for layer in range(num_layers):                  # static unroll over layers
        # Hoisted input projection: ONE (chunk_t*Bp, Hp) @ (Hp, G) matmul for
        # every timestep of the chunk (bf16 operands, f32 accumulation).
        src = emb_ref if layer == 0 else x_scr
        ih_scr[...] = (jnp.dot(src[...], w_ih_ref[layer],
                               preferred_element_type=jnp.float32)
                       + b_ref[layer])

        w_hh_l = w_hh_ref[layer]                     # hoisted out of the time loop
        # TODO(synk): hold w_hh_l in MXU weight registers across the time loop
        # (pltpu.matmul_push_rhs / matmul_acc_lhs / matmul_pop) to remove the
        # per-step RHS reload on the latency-critical recurrence.

        def step(t, carry, w_hh_l=w_hh_l):
            h_prev, c_prev = carry
            row = pl.multiple_of(t * B, B)
            gates = (ih_scr[pl.ds(row, B), :]
                     + jnp.dot(h_prev.astype(w_hh_l.dtype), w_hh_l,
                               preferred_element_type=jnp.float32))
            # One sigmoid + one tanh over the packed 128-lane gate block,
            # blended on the cell-gate lanes; i/f/g/o are aligned to lanes
            # [0, H) with XLU rotations instead of masked 32-lane slices.
            act = jnp.where(g_lanes, jnp.tanh(gates), jax.nn.sigmoid(gates))
            f_a = pltpu.roll(act, shift=G - H, axis=1)
            g_a = pltpu.roll(act, shift=G - 2 * H, axis=1)
            o_a = pltpu.roll(act, shift=G - 3 * H, axis=1)
            c_new = f_a * c_prev + act * g_a         # valid in lanes [0, H)
            h_new = o_a * jnp.tanh(c_new)            # valid in lanes [0, H)
            if mask_tail:                            # static: only if seq padded
                valid = (chunk * chunk_t + t) < seq_len
                h_new = jnp.where(valid, h_new, h_prev)
                c_new = jnp.where(valid, c_new, c_prev)
            x_scr[pl.ds(row, B), :] = h_new.astype(x_scr.dtype)
            return h_new, c_new

        h_fin, c_fin = lax.fori_loop(0, chunk_t, step,
                                     (h_scr[layer], c_scr[layer]),
                                     unroll=unroll)
        h_scr[layer] = h_fin                          # one write per layer/chunk
        c_scr[layer] = c_fin

    # Last-layer hidden states stream to HBM for the tiled output projection.
    hid_ref[...] = x_scr[...]
    hn_ref[...] = h_scr[...]
    cn_ref[...] = c_scr[...]


def _out_proj_kernel(x_ref, w_ref, b_ref, y_ref, acc_ref):
    """Tiled y = x @ W_out + b over a (rows, vocab, K) grid."""
    @pl.when(pl.program_id(2) == 0)
    def _():
        acc_ref[...] = jnp.zeros_like(acc_ref)
    acc_ref[...] += jnp.dot(x_ref[...], w_ref[...],
                            preferred_element_type=jnp.float32)

    @pl.when(pl.program_id(2) == pl.num_programs(2) - 1)
    def _():
        y_ref[...] = (acc_ref[...] + b_ref[...]).astype(y_ref.dtype)


def _round_up(x, m):
    return (x + m - 1) // m * m


def decoder_forward(x_tokens, states, params, *, chunk_t=None):
    """Pallas-backed equivalent of Decoder.forward(x, states).

    params use torch layouts:
      embedding (V, H), w_ih/w_hh (L, 4H, H), b_ih/b_hh (L, 4H),
      w_out (V, H), b_out (V,)
    """
    emb_table = params["embedding"]
    w_ih, w_hh = params["w_ih"], params["w_hh"]
    bias = params["b_ih"] + params["b_hh"]
    w_out, b_out = params["w_out"], params["b_out"]
    h0, c0 = states

    seq_len, batch = x_tokens.shape
    num_layers, _, hidden = h0.shape
    vocab = w_out.shape[0]

    # Packed-gate layout needs all four gates in one 128-lane block.
    # TODO(synk): fall back to a per-gate 128-lane-padded layout when 4*H > 128.
    assert 4 * hidden <= 128, "packed-gate kernel requires hidden <= 32"

    Hp = 128                                    # activation lane width (1 vreg col)
    G = 128                                     # packed gate width (4*H <= 128)
    Vp = max(_round_up(vocab, 128), 128)
    Bp = max(_round_up(batch, 8), 8)

    # Chunk size: rows per hoisted matmul ~ MXU height; VMEM per chunk stays
    # small (<< v7x's 64 MiB; explicit vmem_limit_bytes below).
    if chunk_t is None:
        chunk_t = max(1, min(seq_len, 256 // Bp))
    num_chunks = (seq_len + chunk_t - 1) // chunk_t
    Sp = num_chunks * chunk_t
    mask_tail = Sp != seq_len
    rows_c = chunk_t * Bp                        # rows per chunk

    # --- weight prep (torch -> packed-gate TPU layout, bf16) -----------------
    def prep_gate_w(w):                          # (L, 4H, H), rows [i;f;g;o]
        w = jnp.transpose(w, (0, 2, 1))          # (L, H_in, 4H_out), gate k at cols [kH,(k+1)H)
        w = jnp.pad(w, ((0, 0), (0, Hp - hidden), (0, G - 4 * hidden)))
        return w.astype(_COMPUTE_DTYPE)          # (L, Hp, G); rows >= H are zero

    w_ih_p = prep_gate_w(w_ih)
    w_hh_p = prep_gate_w(w_hh)
    b_p = jnp.pad(bias, ((0, 0), (0, G - 4 * hidden)))[:, None, :]      # (L,1,G) f32
    w_out_p = jnp.pad(w_out.T, ((0, Hp - hidden), (0, Vp - vocab))).astype(_COMPUTE_DTYPE)
    b_out_p = jnp.pad(b_out, (0, Vp - vocab))[None, :].astype(jnp.float32)

    # TODO(synk): embedding lookup is a data-dependent gather; kept as JAX glue
    # (could move in-kernel via scalar-prefetched token ids + DMA row gather).
    emb = jnp.pad(emb_table, ((0, 0), (0, Hp - hidden)))[x_tokens]       # (S,B,Hp)
    emb = jnp.pad(emb, ((0, Sp - seq_len), (0, Bp - batch), (0, 0)))     # (Sp,Bp,Hp)
    emb = emb.reshape(Sp * Bp, Hp).astype(_COMPUTE_DTYPE)

    h0_p = jnp.pad(h0, ((0, 0), (0, Bp - batch), (0, Hp - hidden))).astype(jnp.float32)
    c0_p = jnp.pad(c0, ((0, 0), (0, Bp - batch), (0, Hp - hidden))).astype(jnp.float32)

    # --- kernel 1: stacked LSTM over a sequence-chunk grid -------------------
    kernel = functools.partial(
        _lstm_chunk_kernel, seq_len=seq_len, chunk_t=chunk_t,
        num_layers=num_layers, batch_p=Bp, hidden=hidden, gates_p=G,
        mask_tail=mask_tail, unroll=min(chunk_t, 8))

    const3 = lambda s: (0, 0, 0)                 # resident (DMA'd once) operands
    vmem_limit = 48 * 1024 * 1024                # fits v7x's 64 MiB physical VMEM

    hid, hn_p, cn_p = pl.pallas_call(
        kernel,
        grid=(num_chunks,),
        in_specs=[
            pl.BlockSpec((rows_c, Hp), lambda s: (s, 0)),         # emb chunk
            pl.BlockSpec((num_layers, Hp, G), const3),            # w_ih (resident)
            pl.BlockSpec((num_layers, Hp, G), const3),            # w_hh (resident)
            pl.BlockSpec((num_layers, 1, G), const3),             # bias (resident)
            pl.BlockSpec((num_layers, Bp, Hp), const3),           # h0
            pl.BlockSpec((num_layers, Bp, Hp), const3),           # c0
        ],
        out_specs=(
            pl.BlockSpec((rows_c, Hp), lambda s: (s, 0)),         # last-layer h
            pl.BlockSpec((num_layers, Bp, Hp), const3),           # h_n
            pl.BlockSpec((num_layers, Bp, Hp), const3),           # c_n
        ),
        out_shape=(
            jax.ShapeDtypeStruct((Sp * Bp, Hp), _COMPUTE_DTYPE),
            jax.ShapeDtypeStruct((num_layers, Bp, Hp), jnp.float32),
            jax.ShapeDtypeStruct((num_layers, Bp, Hp), jnp.float32),
        ),
        scratch_shapes=[
            pltpu.VMEM((num_layers, Bp, Hp), jnp.float32),        # h carry
            pltpu.VMEM((num_layers, Bp, Hp), jnp.float32),        # c carry
            pltpu.VMEM((rows_c, Hp), _COMPUTE_DTYPE),             # layer activations
            pltpu.VMEM((rows_c, G), jnp.float32),                 # hoisted input proj
        ],
        compiler_params=pltpu.CompilerParams(
            dimension_semantics=("arbitrary",),
            vmem_limit_bytes=vmem_limit),
    )(emb, w_ih_p, w_hh_p, b_p, h0_p, c0_p)

    # --- kernel 2: tiled output projection y = hid @ W_out^T + b -------------
    rows = Sp * Bp
    tm = rows_c                                   # divides rows by construction
    tn = 512 if Vp % 512 == 0 else (256 if Vp % 256 == 0 else 128)
    tk = Hp                                       # K = 128 (single k step here)

    y_p = pl.pallas_call(
        _out_proj_kernel,
        grid=(rows // tm, Vp // tn, Hp // tk),
        in_specs=[
            pl.BlockSpec((tm, tk), lambda i, j, k: (i, k)),
            pl.BlockSpec((tk, tn), lambda i, j, k: (k, j)),
            pl.BlockSpec((1, tn), lambda i, j, k: (0, j)),
        ],
        out_specs=pl.BlockSpec((tm, tn), lambda i, j, k: (i, j)),
        out_shape=jax.ShapeDtypeStruct((rows, Vp), jnp.float32),
        scratch_shapes=[pltpu.VMEM((tm, tn), jnp.float32)],
        compiler_params=pltpu.CompilerParams(
            dimension_semantics=("parallel", "parallel", "arbitrary"),
            vmem_limit_bytes=vmem_limit),
    )(hid, w_out_p, b_out_p)

    y = y_p.reshape(Sp, Bp, Vp)[:seq_len, :batch, :vocab]
    h_n = hn_p[:, :batch, :hidden]
    c_n = cn_p[:, :batch, :hidden]
    return y, (h_n, c_n)


def decoder_reference(x_tokens, states, params):
    """Pure-JAX f32 reference mirroring torch semantics (for validation)."""
    emb = params["embedding"][x_tokens]              # (seq, batch, H)
    h, c = states
    h = [h[l] for l in range(h.shape[0])]
    c = [c[l] for l in range(c.shape[0])]
    num_layers = len(h)
    H = emb.shape[-1]
    ys = []
    for t in range(emb.shape[0]):
        inp = emb[t]
        for l in range(num_layers):
            gates = (inp @ params["w_ih"][l].T + h[l] @ params["w_hh"][l].T
                     + params["b_ih"][l] + params["b_hh"][l])
            i = jax.nn.sigmoid(gates[:, 0 * H:1 * H])
            f = jax.nn.sigmoid(gates[:, 1 * H:2 * H])
            g = jnp.tanh(gates[:, 2 * H:3 * H])
            o = jax.nn.sigmoid(gates[:, 3 * H:4 * H])
            c[l] = f * c[l] + i * g
            h[l] = o * jnp.tanh(c[l])
            inp = h[l]
        ys.append(inp @ params["w_out"].T + params["b_out"])
    return jnp.stack(ys), (jnp.stack(h), jnp.stack(c))


if __name__ == "__main__":
    hidden_dim = 32
    output_dim = 64          # vocab size
    num_layers = 4
    seq_len = 8
    batch = 2

    key = jax.random.PRNGKey(0)
    ks = jax.random.split(key, 10)

    # Deterministic synthetic parameters (stand-in for wv.vectors / torch init).
    emb_table = 0.1 * jax.random.normal(ks[0], (output_dim, hidden_dim), jnp.float32)
    emb_table = emb_table.at[0].set(0.0)   # padding_idx=0 row
    w_ih = 0.1 * jax.random.normal(ks[1], (num_layers, 4 * hidden_dim, hidden_dim), jnp.float32)
    w_hh = 0.1 * jax.random.normal(ks[2], (num_layers, 4 * hidden_dim, hidden_dim), jnp.float32)
    b_ih = 0.1 * jax.random.normal(ks[3], (num_layers, 4 * hidden_dim), jnp.float32)
    b_hh = 0.1 * jax.random.normal(ks[4], (num_layers, 4 * hidden_dim), jnp.float32)
    w_out = 0.1 * jax.random.normal(ks[5], (output_dim, hidden_dim), jnp.float32)
    b_out = 0.1 * jax.random.normal(ks[6], (output_dim,), jnp.float32)

    params = {
        "embedding": emb_table,
        "w_ih": w_ih, "w_hh": w_hh,
        "b_ih": b_ih, "b_hh": b_hh,
        "w_out": w_out, "b_out": b_out,
    }

    x = jax.random.randint(ks[7], (seq_len, batch), 0, output_dim, jnp.int32)
    h0 = 0.1 * jax.random.normal(ks[8], (num_layers, batch, hidden_dim), jnp.float32)
    c0 = 0.1 * jax.random.normal(ks[9], (num_layers, batch, hidden_dim), jnp.float32)

    # chunk_t=3 -> 3 seq chunks with a padded tail timestep: exercises the
    # cross-chunk state carry and the tail-masking path.
    y, (h_n, c_n) = decoder_forward(x, (h0, c0), params, chunk_t=3)
    jax.block_until_ready((y, h_n, c_n))

    y_r, (h_r, c_r) = decoder_reference(x, (h0, c0), params)
    # bf16 matmul operands (f32 accumulation) -> compare at a looser tolerance.
    assert jnp.allclose(y, y_r, atol=1e-2, rtol=1e-2), float(jnp.max(jnp.abs(y - y_r)))
    assert jnp.allclose(h_n, h_r, atol=1e-2, rtol=1e-2)
    assert jnp.allclose(c_n, c_r, atol=1e-2, rtol=1e-2)

    print("KERNEL_OK")
</pallas_src>

<mosaic_0001>
module attributes {stable_mosaic.version = 11 : i64} {
  func.func @_lstm_chunk_kernel(%arg0: i32, %arg1: memref<24x128xbf16, #tpu.memory_space<vmem>>, %arg2: memref<4x128x128xbf16, #tpu.memory_space<vmem>>, %arg3: memref<4x128x128xbf16, #tpu.memory_space<vmem>>, %arg4: memref<4x1x128xf32, #tpu.memory_space<vmem>>, %arg5: memref<4x8x128xf32, #tpu.memory_space<vmem>>, %arg6: memref<4x8x128xf32, #tpu.memory_space<vmem>>, %arg7: memref<24x128xbf16, #tpu.memory_space<vmem>>, %arg8: memref<4x8x128xf32, #tpu.memory_space<vmem>>, %arg9: memref<4x8x128xf32, #tpu.memory_space<vmem>>, %arg10: memref<4x8x128xf32, #tpu.memory_space<vmem>>, %arg11: memref<4x8x128xf32, #tpu.memory_space<vmem>>, %arg12: memref<24x128xbf16, #tpu.memory_space<vmem>>, %arg13: memref<24x128xf32, #tpu.memory_space<vmem>>) attributes {dimension_semantics = [#tpu.dimension_semantics<arbitrary>], iteration_bounds = array<i64: 3>, scalar_prefetch = 0 : i64, scratch_operands = 4 : i64, tpu.core_type = #tpu.core_type<tc>, window_params = [{transform_indices = @transform_0, window_bounds = array<i64: 24, 128>}, {pipeline_mode = #tpu.pipeline_mode<synchronous>, transform_indices = @transform_1, window_bounds = array<i64: 4, 128, 128>}, {pipeline_mode = #tpu.pipeline_mode<synchronous>, transform_indices = @transform_2, window_bounds = array<i64: 4, 128, 128>}, {pipeline_mode = #tpu.pipeline_mode<synchronous>, transform_indices = @transform_3, window_bounds = array<i64: 4, 1, 128>}, {pipeline_mode = #tpu.pipeline_mode<synchronous>, transform_indices = @transform_4, window_bounds = array<i64: 4, 8, 128>}, {pipeline_mode = #tpu.pipeline_mode<synchronous>, transform_indices = @transform_5, window_bounds = array<i64: 4, 8, 128>}, {transform_indices = @transform_6, window_bounds = array<i64: 24, 128>}, {pipeline_mode = #tpu.pipeline_mode<synchronous>, transform_indices = @transform_7, window_bounds = array<i64: 4, 8, 128>}, {pipeline_mode = #tpu.pipeline_mode<synchronous>, transform_indices = @transform_8, window_bounds = array<i64: 4, 8, 128>}]} {
    %c0_i32 = arith.constant 0 : i32
    %0 = arith.cmpi eq, %arg0, %c0_i32 : i32
    %1 = arith.extui %0 : i1 to i32
    %c0_i32_0 = arith.constant 0 : i32
    %2 = arith.cmpi ne, %1, %c0_i32_0 : i32
    scf.if %2 {
      %c0_247 = arith.constant 0 : index
      %c0_248 = arith.constant 0 : index
      %c0_249 = arith.constant 0 : index
      %459 = vector.load %arg5[%c0_247, %c0_248, %c0_249] : memref<4x8x128xf32, #tpu.memory_space<vmem>>, vector<4x8x128xf32>
      %c0_250 = arith.constant 0 : index
      %c0_251 = arith.constant 0 : index
      %c0_252 = arith.constant 0 : index
      %460 = vector.load %arg10[%c0_250, %c0_251, %c0_252] : memref<4x8x128xf32, #tpu.memory_space<vmem>>, vector<4x8x128xf32>
      tpu.vector_store %arg10[%c0_250, %c0_251, %c0_252], %459 {strides = array<i32>} : memref<4x8x128xf32, #tpu.memory_space<vmem>>, vector<4x8x128xf32>,
      %c0_253 = arith.constant 0 : index
      %c0_254 = arith.constant 0 : index
      %c0_255 = arith.constant 0 : index
      %461 = vector.load %arg6[%c0_253, %c0_254, %c0_255] : memref<4x8x128xf32, #tpu.memory_space<vmem>>, vector<4x8x128xf32>
      %c0_256 = arith.constant 0 : index
      %c0_257 = arith.constant 0 : index
      %c0_258 = arith.constant 0 : index
      %462 = vector.load %arg11[%c0_256, %c0_257, %c0_258] : memref<4x8x128xf32, #tpu.memory_space<vmem>>, vector<4x8x128xf32>
      tpu.vector_store %arg11[%c0_256, %c0_257, %c0_258], %461 {strides = array<i32>} : memref<4x8x128xf32, #tpu.memory_space<vmem>>, vector<4x8x128xf32>,
    } else {
    }
    %3 = tpu.iota {dimensions = array<i32: 1>} : vector<8x128xi32>
    %c64_i32 = arith.constant 64 : i32
    %4 = vector.broadcast %c64_i32 : i32 to vector<8x128xi32>
    %5 = arith.cmpi sge, %3, %4 : vector<8x128xi32>
    %c96_i32 = arith.constant 96 : i32
    %6 = vector.broadcast %c96_i32 : i32 to vector<8x128xi32>
    %7 = arith.cmpi slt, %3, %6 : vector<8x128xi32>
    %8 = arith.andi %5, %7 : vector<8x128xi1>
    %c0 = arith.constant 0 : index
    %c0_1 = arith.constant 0 : index
    %9 = vector.load %arg1[%c0, %c0_1] : memref<24x128xbf16, #tpu.memory_space<vmem>>, vector<24x128xbf16>
    %c0_2 = arith.constant 0 : index
    %c0_3 = arith.constant 0 : index
    %c0_4 = arith.constant 0 : index
    %10 = vector.load %arg2[%c0_2, %c0_3, %c0_4] : memref<4x128x128xbf16, #tpu.memory_space<vmem>>, vector<1x128x128xbf16>
    %11 = vector.shape_cast %10 : vector<1x128x128xbf16> to vector<128x128xbf16>
    %cst = arith.constant dense<0.000000e+00> : vector<24x128xf32>
    %12 = tpu.matmul %9, %11, %cst {dimension_numbers = #tpu.dot_dimension_numbers<[1], [0], [0], [1], [0, 0, 1, 1], [], []>} : vector<24x128xbf16>, vector<128x128xbf16>, vector<24x128xf32> -> vector<24x128xf32>
    %c0_5 = arith.constant 0 : index
    %c0_6 = arith.constant 0 : index
    %c0_7 = arith.constant 0 : index
    %13 = vector.load %arg4[%c0_5, %c0_6, %c0_7] : memref<4x1x128xf32, #tpu.memory_space<vmem>>, vector<1x1x128xf32>
    %14 = vector.shape_cast %13 : vector<1x1x128xf32> to vector<1x128xf32>
    %15 = vector.broadcast %14 : vector<1x128xf32> to vector<24x128xf32>
    %16 = arith.addf %12, %15 : vector<24x128xf32>
    %c0_8 = arith.constant 0 : index
    %c0_9 = arith.constant 0 : index
    %17 = vector.load %arg13[%c0_8, %c0_9] : memref<24x128xf32, #tpu.memory_space<vmem>>, vector<24x128xf32>
    tpu.vector_store %arg13[%c0_8, %c0_9], %16 {strides = array<i32>} : memref<24x128xf32, #tpu.memory_space<vmem>>, vector<24x128xf32>,
    %c0_10 = arith.constant 0 : index
    %c0_11 = arith.constant 0 : index
    %c0_12 = arith.constant 0 : index
    %18 = vector.load %arg3[%c0_10, %c0_11, %c0_12] : memref<4x128x128xbf16, #tpu.memory_space<vmem>>, vector<1x128x128xbf16>
    %19 = vector.shape_cast %18 : vector<1x128x128xbf16> to vector<128x128xbf16>
    %c0_13 = arith.constant 0 : index
    %c0_14 = arith.constant 0 : index
    %c0_15 = arith.constant 0 : index
    %20 = vector.load %arg10[%c0_13, %c0_14, %c0_15] : memref<4x8x128xf32, #tpu.memory_space<vmem>>, vector<1x8x128xf32>
    %21 = vector.shape_cast %20 : vector<1x8x128xf32> to vector<8x128xf32>
    %c0_16 = arith.constant 0 : index
    %c0_17 = arith.constant 0 : index
    %c0_18 = arith.constant 0 : index
    %22 = vector.load %arg11[%c0_16, %c0_17, %c0_18] : memref<4x8x128xf32, #tpu.memory_space<vmem>>, vector<1x8x128xf32>
    %23 = vector.shape_cast %22 : vector<1x8x128xf32> to vector<8x128xf32>
    %c0_i32_19 = arith.constant 0 : i32
    %c8_i32 = arith.constant 8 : i32
    %24 = arith.muli %c0_i32_19, %c8_i32 : i32
    %25 = tpu.assume_multiple %24, 8 : i32
    %26 = arith.index_cast %25 : i32 to index
    %c0_20 = arith.constant 0 : index
    %27 = vector.load %arg13[%26, %c0_20] : memref<24x128xf32, #tpu.memory_space<vmem>>, vector<8x128xf32>
    %28 = arith.truncf %21 : vector<8x128xf32> to vector<8x128xbf16>
    %cst_21 = arith.constant dense<0.000000e+00> : vector<8x128xf32>
    %29 = tpu.matmul %28, %19, %cst_21 {dimension_numbers = #tpu.dot_dimension_numbers<[1], [0], [0], [1], [0, 0, 1, 1], [], []>} : vector<8x128xbf16>, vector<128x128xbf16>, vector<8x128xf32> -> vector<8x128xf32>
    %30 = arith.addf %27, %29 : vector<8x128xf32>
    %31 = math.tanh %30 : vector<8x128xf32>
    %32 = arith.negf %30 : vector<8x128xf32>
    %33 = math.exp %32 : vector<8x128xf32>
    %cst_22 = arith.constant 1.000000e+00 : f32
    %34 = vector.broadcast %cst_22 : f32 to vector<8x128xf32>
    %35 = arith.addf %34, %33 : vector<8x128xf32>
    %36 = arith.divf %34, %35 : vector<8x128xf32>
    %37 = arith.select %8, %31, %36 : vector<8x128xi1>, vector<8x128xf32>
    %c96_i32_23 = arith.constant 96 : i32
    %38 = tpu.dynamic_rotate %37 by %c96_i32_23 dim 1 : vector<8x128xf32>, i32 -> vector<8x128xf32>
    %c64_i32_24 = arith.constant 64 : i32
    %39 = tpu.dynamic_rotate %37 by %c64_i32_24 dim 1 : vector<8x128xf32>, i32 -> vector<8x128xf32>
    %c32_i32 = arith.constant 32 : i32
    %40 = tpu.dynamic_rotate %37 by %c32_i32 dim 1 : vector<8x128xf32>, i32 -> vector<8x128xf32>
    %41 = arith.mulf %38, %23 : vector<8x128xf32>
    %42 = arith.mulf %37, %39 : vector<8x128xf32>
    %43 = arith.addf %41, %42 : vector<8x128xf32>
    %44 = math.tanh %43 : vector<8x128xf32>
    %45 = arith.mulf %40, %44 : vector<8x128xf32>
    %c3_i32 = arith.constant 3 : i32
    %46 = arith.muli %arg0, %c3_i32 : i32
    %47 = arith.addi %46, %c0_i32_19 : i32
    %c8_i32_25 = arith.constant 8 : i32
    %48 = arith.cmpi slt, %47, %c8_i32_25 : i32
    %49 = arith.select %48, %45, %21 : vector<8x128xf32>
    %50 = arith.select %48, %43, %23 : vector<8x128xf32>
    %51 = arith.truncf %49 : vector<8x128xf32> to vector<8x128xbf16>
    %52 = arith.index_cast %25 : i32 to index
    %c0_26 = arith.constant 0 : index
    %53 = vector.load %arg12[%52, %c0_26] : memref<24x128xbf16, #tpu.memory_space<vmem>>, vector<8x128xbf16>
    tpu.vector_store %arg12[%52, %c0_26], %51 {strides = array<i32>} : memref<24x128xbf16, #tpu.memory_space<vmem>>, vector<8x128xbf16>,
    %c1_i32 = arith.constant 1 : i32
    %c8_i32_27 = arith.constant 8 : i32
    %54 = arith.muli %c1_i32, %c8_i32_27 : i32
    %55 = tpu.assume_multiple %54, 8 : i32
    %56 = arith.index_cast %55 : i32 to index
    %c0_28 = arith.constant 0 : index
    %57 = vector.load %arg13[%56, %c0_28] : memref<24x128xf32, #tpu.memory_space<vmem>>, vector<8x128xf32>
    %58 = arith.truncf %49 : vector<8x128xf32> to vector<8x128xbf16>
    %cst_29 = arith.constant dense<0.000000e+00> : vector<8x128xf32>
    %59 = tpu.matmul %58, %19, %cst_29 {dimension_numbers = #tpu.dot_dimension_numbers<[1], [0], [0], [1], [0, 0, 1, 1], [], []>} : vector<8x128xbf16>, vector<128x128xbf16>, vector<8x128xf32> -> vector<8x128xf32>
    %60 = arith.addf %57, %59 : vector<8x128xf32>
    %61 = math.tanh %60 : vector<8x128xf32>
    %62 = arith.negf %60 : vector<8x128xf32>
    %63 = math.exp %62 : vector<8x128xf32>
    %cst_30 = arith.constant 1.000000e+00 : f32
    %64 = vector.broadcast %cst_30 : f32 to vector<8x128xf32>
    %65 = arith.addf %64, %63 : vector<8x128xf32>
    %66 = arith.divf %64, %65 : vector<8x128xf32>
    %67 = arith.select %8, %61, %66 : vector<8x128xi1>, vector<8x128xf32>
    %c96_i32_31 = arith.constant 96 : i32
    %68 = tpu.dynamic_rotate %67 by %c96_i32_31 dim 1 : vector<8x128xf32>, i32 -> vector<8x128xf32>
    %c64_i32_32 = arith.constant 64 : i32
    %69 = tpu.dynamic_rotate %67 by %c64_i32_32 dim 1 : vector<8x128xf32>, i32 -> vector<8x128xf32>
    %c32_i32_33 = arith.constant 32 : i32
    %70 = tpu.dynamic_rotate %67 by %c32_i32_33 dim 1 : vector<8x128xf32>, i32 -> vector<8x128xf32>
    %71 = arith.mulf %68, %50 : vector<8x128xf32>
    %72 = arith.mulf %67, %69 : vector<8x128xf32>
    %73 = arith.addf %71, %72 : vector<8x128xf32>
    %74 = math.tanh %73 : vector<8x128xf32>
    %75 = arith.mulf %70, %74 : vector<8x128xf32>
    %c3_i32_34 = arith.constant 3 : i32
    %76 = arith.muli %arg0, %c3_i32_34 : i32
    %77 = arith.addi %76, %c1_i32 : i32
    %c8_i32_35 = arith.constant 8 : i32
    %78 = arith.cmpi slt, %77, %c8_i32_35 : i32
    %79 = arith.select %78, %75, %49 : vector<8x128xf32>
    %80 = arith.select %78, %73, %50 : vector<8x128xf32>
    %81 = arith.truncf %79 : vector<8x128xf32> to vector<8x128xbf16>
    %82 = arith.index_cast %55 : i32 to index
    %c0_36 = arith.constant 0 : index
    %83 = vector.load %arg12[%82, %c0_36] : memref<24x128xbf16, #tpu.memory_space<vmem>>, vector<8x128xbf16>
    tpu.vector_store %arg12[%82, %c0_36], %81 {strides = array<i32>} : memref<24x128xbf16, #tpu.memory_space<vmem>>, vector<8x128xbf16>,
    %c2_i32 = arith.constant 2 : i32
    %c8_i32_37 = arith.constant 8 : i32
    %84 = arith.muli %c2_i32, %c8_i32_37 : i32
    %85 = tpu.assume_multiple %84, 8 : i32
    %86 = arith.index_cast %85 : i32 to index
    %c0_38 = arith.constant 0 : index
    %87 = vector.load %arg13[%86, %c0_38] : memref<24x128xf32, #tpu.memory_space<vmem>>, vector<8x128xf32>
    %88 = arith.truncf %79 : vector<8x128xf32> to vector<8x128xbf16>
    %cst_39 = arith.constant dense<0.000000e+00> : vector<8x128xf32>
    %89 = tpu.matmul %88, %19, %cst_39 {dimension_numbers = #tpu.dot_dimension_numbers<[1], [0], [0], [1], [0, 0, 1, 1], [], []>} : vector<8x128xbf16>, vector<128x128xbf16>, vector<8x128xf32> -> vector<8x128xf32>
    %90 = arith.addf %87, %89 : vector<8x128xf32>
    %91 = math.tanh %90 : vector<8x128xf32>
    %92 = arith.negf %90 : vector<8x128xf32>
    %93 = math.exp %92 : vector<8x128xf32>
    %cst_40 = arith.constant 1.000000e+00 : f32
    %94 = vector.broadcast %cst_40 : f32 to vector<8x128xf32>
    %95 = arith.addf %94, %93 : vector<8x128xf32>
    %96 = arith.divf %94, %95 : vector<8x128xf32>
    %97 = arith.select %8, %91, %96 : vector<8x128xi1>, vector<8x128xf32>
    %c96_i32_41 = arith.constant 96 : i32
    %98 = tpu.dynamic_rotate %97 by %c96_i32_41 dim 1 : vector<8x128xf32>, i32 -> vector<8x128xf32>
    %c64_i32_42 = arith.constant 64 : i32
    %99 = tpu.dynamic_rotate %97 by %c64_i32_42 dim 1 : vector<8x128xf32>, i32 -> vector<8x128xf32>
    %c32_i32_43 = arith.constant 32 : i32
    %100 = tpu.dynamic_rotate %97 by %c32_i32_43 dim 1 : vector<8x128xf32>, i32 -> vector<8x128xf32>
    %101 = arith.mulf %98, %80 : vector<8x128xf32>
    %102 = arith.mulf %97, %99 : vector<8x128xf32>
    %103 = arith.addf %101, %102 : vector<8x128xf32>
    %104 = math.tanh %103 : vector<8x128xf32>
    %105 = arith.mulf %100, %104 : vector<8x128xf32>
    %c3_i32_44 = arith.constant 3 : i32
    %106 = arith.muli %arg0, %c3_i32_44 : i32
    %107 = arith.addi %106, %c2_i32 : i32
    %c8_i32_45 = arith.constant 8 : i32
    %108 = arith.cmpi slt, %107, %c8_i32_45 : i32
    %109 = arith.select %108, %105, %79 : vector<8x128xf32>
    %110 = arith.select %108, %103, %80 : vector<8x128xf32>
    %111 = arith.truncf %109 : vector<8x128xf32> to vector<8x128xbf16>
    %112 = arith.index_cast %85 : i32 to index
    %c0_46 = arith.constant 0 : index
    %113 = vector.load %arg12[%112, %c0_46] : memref<24x128xbf16, #tpu.memory_space<vmem>>, vector<8x128xbf16>
    tpu.vector_store %arg12[%112, %c0_46], %111 {strides = array<i32>} : memref<24x128xbf16, #tpu.memory_space<vmem>>, vector<8x128xbf16>,
    %c3_i32_47 = arith.constant 3 : i32
    %c0_48 = arith.constant 0 : index
    %c0_49 = arith.constant 0 : index
    %c0_50 = arith.constant 0 : index
    %114 = vector.load %arg10[%c0_48, %c0_49, %c0_50] : memref<4x8x128xf32, #tpu.memory_space<vmem>>, vector<1x8x128xf32>
    %115 = vector.shape_cast %114 : vector<1x8x128xf32> to vector<8x128xf32>
    %116 = vector.shape_cast %109 : vector<8x128xf32> to vector<1x8x128xf32>
    tpu.vector_store %arg10[%c0_48, %c0_49, %c0_50], %116 {strides = array<i32>} : memref<4x8x128xf32, #tpu.memory_space<vmem>>, vector<1x8x128xf32>,
    %c0_51 = arith.constant 0 : index
    %c0_52 = arith.constant 0 : index
    %c0_53 = arith.constant 0 : index
    %117 = vector.load %arg11[%c0_51, %c0_52, %c0_53] : memref<4x8x128xf32, #tpu.memory_space<vmem>>, vector<1x8x128xf32>
    %118 = vector.shape_cast %117 : vector<1x8x128xf32> to vector<8x128xf32>
    %119 = vector.shape_cast %110 : vector<8x128xf32> to vector<1x8x128xf32>
    tpu.vector_store %arg11[%c0_51, %c0_52, %c0_53], %119 {strides = array<i32>} : memref<4x8x128xf32, #tpu.memory_space<vmem>>, vector<1x8x128xf32>,
    %c0_54 = arith.constant 0 : index
    %c0_55 = arith.constant 0 : index
    %120 = vector.load %arg12[%c0_54, %c0_55] : memref<24x128xbf16, #tpu.memory_space<vmem>>, vector<24x128xbf16>
    %c1 = arith.constant 1 : index
    %c0_56 = arith.constant 0 : index
    %c0_57 = arith.constant 0 : index
    %121 = vector.load %arg2[%c1, %c0_56, %c0_57] : memref<4x128x128xbf16, #tpu.memory_space<vmem>>, vector<1x128x128xbf16>
    %122 = vector.shape_cast %121 : vector<1x128x128xbf16> to vector<128x128xbf16>
    %cst_58 = arith.constant dense<0.000000e+00> : vector<24x128xf32>
    %123 = tpu.matmul %120, %122, %cst_58 {dimension_numbers = #tpu.dot_dimension_numbers<[1], [0], [0], [1], [0, 0, 1, 1], [], []>} : vector<24x128xbf16>, vector<128x128xbf16>, vector<24x128xf32> -> vector<24x128xf32>
    %c1_59 = arith.constant 1 : index
    %c0_60 = arith.constant 0 : index
    %c0_61 = arith.constant 0 : index
    %124 = vector.load %arg4[%c1_59, %c0_60, %c0_61] : memref<4x1x128xf32, #tpu.memory_space<vmem>>, vector<1x1x128xf32>
    %125 = vector.shape_cast %124 : vector<1x1x128xf32> to vector<1x128xf32>
    %126 = vector.broadcast %125 : vector<1x128xf32> to vector<24x128xf32>
    %127 = arith.addf %123, %126 : vector<24x128xf32>
    %c0_62 = arith.constant 0 : index
    %c0_63 = arith.constant 0 : index
    %128 = vector.load %arg13[%c0_62, %c0_63] : memref<24x128xf32, #tpu.memory_space<vmem>>, vector<24x128xf32>
    tpu.vector_store %arg13[%c0_62, %c0_63], %127 {strides = array<i32>} : memref<24x128xf32, #tpu.memory_space<vmem>>, vector<24x128xf32>,
    %c1_64 = arith.constant 1 : index
    %c0_65 = arith.constant 0 : index
    %c0_66 = arith.constant 0 : index
    %129 = vector.load %arg3[%c1_64, %c0_65, %c0_66] : memref<4x128x128xbf16, #tpu.memory_space<vmem>>, vector<1x128x128xbf16>
    %130 = vector.shape_cast %129 : vector<1x128x128xbf16> to vector<128x128xbf16>
    %c1_67 = arith.constant 1 : index
    %c0_68 = arith.constant 0 : index
    %c0_69 = arith.constant 0 : index
    %131 = vector.load %arg10[%c1_67, %c0_68, %c0_69] : memref<4x8x128xf32, #tpu.memory_space<vmem>>, vector<1x8x128xf32>
    %132 = vector.shape_cast %131 : vector<1x8x128xf32> to vector<8x128xf32>
    %c1_70 = arith.constant 1 : index
    %c0_71 = arith.constant 0 : index
    %c0_72 = arith.constant 0 : index
    %133 = vector.load %arg11[%c1_70, %c0_71, %c0_72] : memref<4x8x128xf32, #tpu.memory_space<vmem>>, vector<1x8x128xf32>
    %134 = vector.shape_cast %133 : vector<1x8x128xf32> to vector<8x128xf32>
    %c0_i32_73 = arith.constant 0 : i32
    %c8_i32_74 = arith.constant 8 : i32
    %135 = arith.muli %c0_i32_73, %c8_i32_74 : i32
    %136 = tpu.assume_multiple %135, 8 : i32
    %137 = arith.index_cast %136 : i32 to index
    %c0_75 = arith.constant 0 : index
    %138 = vector.load %arg13[%137, %c0_75] : memref<24x128xf32, #tpu.memory_space<vmem>>, vector<8x128xf32>
    %139 = arith.truncf %132 : vector<8x128xf32> to vector<8x128xbf16>
    %cst_76 = arith.constant dense<0.000000e+00> : vector<8x128xf32>
    %140 = tpu.matmul %139, %130, %cst_76 {dimension_numbers = #tpu.dot_dimension_numbers<[1], [0], [0], [1], [0, 0, 1, 1], [], []>} : vector<8x128xbf16>, vector<128x128xbf16>, vector<8x128xf32> -> vector<8x128xf32>
    %141 = arith.addf %138, %140 : vector<8x128xf32>
    %142 = math.tanh %141 : vector<8x128xf32>
    %143 = arith.negf %141 : vector<8x128xf32>
    %144 = math.exp %143 : vector<8x128xf32>
    %cst_77 = arith.constant 1.000000e+00 : f32
    %145 = vector.broadcast %cst_77 : f32 to vector<8x128xf32>
    %146 = arith.addf %145, %144 : vector<8x128xf32>
    %147 = arith.divf %145, %146 : vector<8x128xf32>
    %148 = arith.select %8, %142, %147 : vector<8x128xi1>, vector<8x128xf32>
    %c96_i32_78 = arith.constant 96 : i32
    %149 = tpu.dynamic_rotate %148 by %c96_i32_78 dim 1 : vector<8x128xf32>, i32 -> vector<8x128xf32>
    %c64_i32_79 = arith.constant 64 : i32
    %150 = tpu.dynamic_rotate %148 by %c64_i32_79 dim 1 : vector<8x128xf32>, i32 -> vector<8x128xf32>
    %c32_i32_80 = arith.constant 32 : i32
    %151 = tpu.dynamic_rotate %148 by %c32_i32_80 dim 1 : vector<8x128xf32>, i32 -> vector<8x128xf32>
    %152 = arith.mulf %149, %134 : vector<8x128xf32>
    %153 = arith.mulf %148, %150 : vector<8x128xf32>
    %154 = arith.addf %152, %153 : vector<8x128xf32>
    %155 = math.tanh %154 : vector<8x128xf32>
    %156 = arith.mulf %151, %155 : vector<8x128xf32>
    %c3_i32_81 = arith.constant 3 : i32
    %157 = arith.muli %arg0, %c3_i32_81 : i32
    %158 = arith.addi %157, %c0_i32_73 : i32
    %c8_i32_82 = arith.constant 8 : i32
    %159 = arith.cmpi slt, %158, %c8_i32_82 : i32
    %160 = arith.select %159, %156, %132 : vector<8x128xf32>
    %161 = arith.select %159, %154, %134 : vector<8x128xf32>
    %162 = arith.truncf %160 : vector<8x128xf32> to vector<8x128xbf16>
    %163 = arith.index_cast %136 : i32 to index
    %c0_83 = arith.constant 0 : index
    %164 = vector.load %arg12[%163, %c0_83] : memref<24x128xbf16, #tpu.memory_space<vmem>>, vector<8x128xbf16>
    tpu.vector_store %arg12[%163, %c0_83], %162 {strides = array<i32>} : memref<24x128xbf16, #tpu.memory_space<vmem>>, vector<8x128xbf16>,
    %c1_i32_84 = arith.constant 1 : i32
    %c8_i32_85 = arith.constant 8 : i32
    %165 = arith.muli %c1_i32_84, %c8_i32_85 : i32
    %166 = tpu.assume_multiple %165, 8 : i32
    %167 = arith.index_cast %166 : i32 to index
    %c0_86 = arith.constant 0 : index
    %168 = vector.load %arg13[%167, %c0_86] : memref<24x128xf32, #tpu.memory_space<vmem>>, vector<8x128xf32>
    %169 = arith.truncf %160 : vector<8x128xf32> to vector<8x128xbf16>
    %cst_87 = arith.constant dense<0.000000e+00> : vector<8x128xf32>
    %170 = tpu.matmul %169, %130, %cst_87 {dimension_numbers = #tpu.dot_dimension_numbers<[1], [0], [0], [1], [0, 0, 1, 1], [], []>} : vector<8x128xbf16>, vector<128x128xbf16>, vector<8x128xf32> -> vector<8x128xf32>
    %171 = arith.addf %168, %170 : vector<8x128xf32>
    %172 = math.tanh %171 : vector<8x128xf32>
    %173 = arith.negf %171 : vector<8x128xf32>
    %174 = math.exp %173 : vector<8x128xf32>
    %cst_88 = arith.constant 1.000000e+00 : f32
    %175 = vector.broadcast %cst_88 : f32 to vector<8x128xf32>
    %176 = arith.addf %175, %174 : vector<8x128xf32>
    %177 = arith.divf %175, %176 : vector<8x128xf32>
    %178 = arith.select %8, %172, %177 : vector<8x128xi1>, vector<8x128xf32>
    %c96_i32_89 = arith.constant 96 : i32
    %179 = tpu.dynamic_rotate %178 by %c96_i32_89 dim 1 : vector<8x128xf32>, i32 -> vector<8x128xf32>
    %c64_i32_90 = arith.constant 64 : i32
    %180 = tpu.dynamic_rotate %178 by %c64_i32_90 dim 1 : vector<8x128xf32>, i32 -> vector<8x128xf32>
    %c32_i32_91 = arith.constant 32 : i32
    %181 = tpu.dynamic_rotate %178 by %c32_i32_91 dim 1 : vector<8x128xf32>, i32 -> vector<8x128xf32>
    %182 = arith.mulf %179, %161 : vector<8x128xf32>
    %183 = arith.mulf %178, %180 : vector<8x128xf32>
    %184 = arith.addf %182, %183 : vector<8x128xf32>
    %185 = math.tanh %184 : vector<8x128xf32>
    %186 = arith.mulf %181, %185 : vector<8x128xf32>
    %c3_i32_92 = arith.constant 3 : i32
    %187 = arith.muli %arg0, %c3_i32_92 : i32
    %188 = arith.addi %187, %c1_i32_84 : i32
    %c8_i32_93 = arith.constant 8 : i32
    %189 = arith.cmpi slt, %188, %c8_i32_93 : i32
    %190 = arith.select %189, %186, %160 : vector<8x128xf32>
    %191 = arith.select %189, %184, %161 : vector<8x128xf32>
    %192 = arith.truncf %190 : vector<8x128xf32> to vector<8x128xbf16>
    %193 = arith.index_cast %166 : i32 to index
    %c0_94 = arith.constant 0 : index
    %194 = vector.load %arg12[%193, %c0_94] : memref<24x128xbf16, #tpu.memory_space<vmem>>, vector<8x128xbf16>
    tpu.vector_store %arg12[%193, %c0_94], %192 {strides = array<i32>} : memref<24x128xbf16, #tpu.memory_space<vmem>>, vector<8x128xbf16>,
    %c2_i32_95 = arith.constant 2 : i32
    %c8_i32_96 = arith.constant 8 : i32
    %195 = arith.muli %c2_i32_95, %c8_i32_96 : i32
    %196 = tpu.assume_multiple %195, 8 : i32
    %197 = arith.index_cast %196 : i32 to index
    %c0_97 = arith.constant 0 : index
    %198 = vector.load %arg13[%197, %c0_97] : memref<24x128xf32, #tpu.memory_space<vmem>>, vector<8x128xf32>
    %199 = arith.truncf %190 : vector<8x128xf32> to vector<8x128xbf16>
    %cst_98 = arith.constant dense<0.000000e+00> : vector<8x128xf32>
    %200 = tpu.matmul %199, %130, %cst_98 {dimension_numbers = #tpu.dot_dimension_numbers<[1], [0], [0], [1], [0, 0, 1, 1], [], []>} : vector<8x128xbf16>, vector<128x128xbf16>, vector<8x128xf32> -> vector<8x128xf32>
    %201 = arith.addf %198, %200 : vector<8x128xf32>
    %202 = math.tanh %201 : vector<8x128xf32>
    %203 = arith.negf %201 : vector<8x128xf32>
    %204 = math.exp %203 : vector<8x128xf32>
    %cst_99 = arith.constant 1.000000e+00 : f32
    %205 = vector.broadcast %cst_99 : f32 to vector<8x128xf32>
    %206 = arith.addf %205, %204 : vector<8x128xf32>
    %207 = arith.divf %205, %206 : vector<8x128xf32>
    %208 = arith.select %8, %202, %207 : vector<8x128xi1>, vector<8x128xf32>
    %c96_i32_100 = arith.constant 96 : i32
    %209 = tpu.dynamic_rotate %208 by %c96_i32_100 dim 1 : vector<8x128xf32>, i32 -> vector<8x128xf32>
    %c64_i32_101 = arith.constant 64 : i32
    %210 = tpu.dynamic_rotate %208 by %c64_i32_101 dim 1 : vector<8x128xf32>, i32 -> vector<8x128xf32>
    %c32_i32_102 = arith.constant 32 : i32
    %211 = tpu.dynamic_rotate %208 by %c32_i32_102 dim 1 : vector<8x128xf32>, i32 -> vector<8x128xf32>
    %212 = arith.mulf %209, %191 : vector<8x128xf32>
    %213 = arith.mulf %208, %210 : vector<8x128xf32>
    %214 = arith.addf %212, %213 : vector<8x128xf32>
    %215 = math.tanh %214 : vector<8x128xf32>
    %216 = arith.mulf %211, %215 : vector<8x128xf32>
    %c3_i32_103 = arith.constant 3 : i32
    %217 = arith.muli %arg0, %c3_i32_103 : i32
    %218 = arith.addi %217, %c2_i32_95 : i32
    %c8_i32_104 = arith.constant 8 : i32
    %219 = arith.cmpi slt, %218, %c8_i32_104 : i32
    %220 = arith.select %219, %216, %190 : vector<8x128xf32>
    %221 = arith.select %219, %214, %191 : vector<8x128xf32>
    %222 = arith.truncf %220 : vector<8x128xf32> to vector<8x128xbf16>
    %223 = arith.index_cast %196 : i32 to index
    %c0_105 = arith.constant 0 : index
    %224 = vector.load %arg12[%223, %c0_105] : memref<24x128xbf16, #tpu.memory_space<vmem>>, vector<8x128xbf16>
    tpu.vector_store %arg12[%223, %c0_105], %222 {strides = array<i32>} : memref<24x128xbf16, #tpu.memory_space<vmem>>, vector<8x128xbf16>,
    %c3_i32_106 = arith.constant 3 : i32
    %c1_107 = arith.constant 1 : index
    %c0_108 = arith.constant 0 : index
    %c0_109 = arith.constant 0 : index
    %225 = vector.load %arg10[%c1_107, %c0_108, %c0_109] : memref<4x8x128xf32, #tpu.memory_space<vmem>>, vector<1x8x128xf32>
    %226 = vector.shape_cast %225 : vector<1x8x128xf32> to vector<8x128xf32>
    %227 = vector.shape_cast %220 : vector<8x128xf32> to vector<1x8x128xf32>
    tpu.vector_store %arg10[%c1_107, %c0_108, %c0_109], %227 {strides = array<i32>} : memref<4x8x128xf32, #tpu.memory_space<vmem>>, vector<1x8x128xf32>,
    %c1_110 = arith.constant 1 : index
    %c0_111 = arith.constant 0 : index
    %c0_112 = arith.constant 0 : index
    %228 = vector.load %arg11[%c1_110, %c0_111, %c0_112] : memref<4x8x128xf32, #tpu.memory_space<vmem>>, vector<1x8x128xf32>
    %229 = vector.shape_cast %228 : vector<1x8x128xf32> to vector<8x128xf32>
    %230 = vector.shape_cast %221 : vector<8x128xf32> to vector<1x8x128xf32>
    tpu.vector_store %arg11[%c1_110, %c0_111, %c0_112], %230 {strides = array<i32>} : memref<4x8x128xf32, #tpu.memory_space<vmem>>, vector<1x8x128xf32>,
    %c0_113 = arith.constant 0 : index
    %c0_114 = arith.constant 0 : index
    %231 = vector.load %arg12[%c0_113, %c0_114] : memref<24x128xbf16, #tpu.memory_space<vmem>>, vector<24x128xbf16>
    %c2 = arith.constant 2 : index
    %c0_115 = arith.constant 0 : index
    %c0_116 = arith.constant 0 : index
    %232 = vector.load %arg2[%c2, %c0_115, %c0_116] : memref<4x128x128xbf16, #tpu.memory_space<vmem>>, vector<1x128x128xbf16>
    %233 = vector.shape_cast %232 : vector<1x128x128xbf16> to vector<128x128xbf16>
    %cst_117 = arith.constant dense<0.000000e+00> : vector<24x128xf32>
    %234 = tpu.matmul %231, %233, %cst_117 {dimension_numbers = #tpu.dot_dimension_numbers<[1], [0], [0], [1], [0, 0, 1, 1], [], []>} : vector<24x128xbf16>, vector<128x128xbf16>, vector<24x128xf32> -> vector<24x128xf32>
    %c2_118 = arith.constant 2 : index
    %c0_119 = arith.constant 0 : index
    %c0_120 = arith.constant 0 : index
    %235 = vector.load %arg4[%c2_118, %c0_119, %c0_120] : memref<4x1x128xf32, #tpu.memory_space<vmem>>, vector<1x1x128xf32>
    %236 = vector.shape_cast %235 : vector<1x1x128xf32> to vector<1x128xf32>
    %237 = vector.broadcast %236 : vector<1x128xf32> to vector<24x128xf32>
    %238 = arith.addf %234, %237 : vector<24x128xf32>
    %c0_121 = arith.constant 0 : index
    %c0_122 = arith.constant 0 : index
    %239 = vector.load %arg13[%c0_121, %c0_122] : memref<24x128xf32, #tpu.memory_space<vmem>>, vector<24x128xf32>
    tpu.vector_store %arg13[%c0_121, %c0_122], %238 {strides = array<i32>} : memref<24x128xf32, #tpu.memory_space<vmem>>, vector<24x128xf32>,
    %c2_123 = arith.constant 2 : index
    %c0_124 = arith.constant 0 : index
    %c0_125 = arith.constant 0 : index
    %240 = vector.load %arg3[%c2_123, %c0_124, %c0_125] : memref<4x128x128xbf16, #tpu.memory_space<vmem>>, vector<1x128x128xbf16>
    %241 = vector.shape_cast %240 : vector<1x128x128xbf16> to vector<128x128xbf16>
    %c2_126 = arith.constant 2 : index
    %c0_127 = arith.constant 0 : index
    %c0_128 = arith.constant 0 : index
    %242 = vector.load %arg10[%c2_126, %c0_127, %c0_128] : memref<4x8x128xf32, #tpu.memory_space<vmem>>, vector<1x8x128xf32>
    %243 = vector.shape_cast %242 : vector<1x8x128xf32> to vector<8x128xf32>
    %c2_129 = arith.constant 2 : index
    %c0_130 = arith.constant 0 : index
    %c0_131 = arith.constant 0 : index
    %244 = vector.load %arg11[%c2_129, %c0_130, %c0_131] : memref<4x8x128xf32, #tpu.memory_space<vmem>>, vector<1x8x128xf32>
    %245 = vector.shape_cast %244 : vector<1x8x128xf32> to vector<8x128xf32>
    %c0_i32_132 = arith.constant 0 : i32
    %c8_i32_133 = arith.constant 8 : i32
    %246 = arith.muli %c0_i32_132, %c8_i32_133 : i32
    %247 = tpu.assume_multiple %246, 8 : i32
    %248 = arith.index_cast %247 : i32 to index
    %c0_134 = arith.constant 0 : index
    %249 = vector.load %arg13[%248, %c0_134] : memref<24x128xf32, #tpu.memory_space<vmem>>, vector<8x128xf32>
    %250 = arith.truncf %243 : vector<8x128xf32> to vector<8x128xbf16>
    %cst_135 = arith.constant dense<0.000000e+00> : vector<8x128xf32>
    %251 = tpu.matmul %250, %241, %cst_135 {dimension_numbers = #tpu.dot_dimension_numbers<[1], [0], [0], [1], [0, 0, 1, 1], [], []>} : vector<8x128xbf16>, vector<128x128xbf16>, vector<8x128xf32> -> vector<8x128xf32>
    %252 = arith.addf %249, %251 : vector<8x128xf32>
    %253 = math.tanh %252 : vector<8x128xf32>
    %254 = arith.negf %252 : vector<8x128xf32>
    %255 = math.exp %254 : vector<8x128xf32>
    %cst_136 = arith.constant 1.000000e+00 : f32
    %256 = vector.broadcast %cst_136 : f32 to vector<8x128xf32>
    %257 = arith.addf %256, %255 : vector<8x128xf32>
    %258 = arith.divf %256, %257 : vector<8x128xf32>
    %259 = arith.select %8, %253, %258 : vector<8x128xi1>, vector<8x128xf32>
    %c96_i32_137 = arith.constant 96 : i32
    %260 = tpu.dynamic_rotate %259 by %c96_i32_137 dim 1 : vector<8x128xf32>, i32 -> vector<8x128xf32>
    %c64_i32_138 = arith.constant 64 : i32
    %261 = tpu.dynamic_rotate %259 by %c64_i32_138 dim 1 : vector<8x128xf32>, i32 -> vector<8x128xf32>
    %c32_i32_139 = arith.constant 32 : i32
    %262 = tpu.dynamic_rotate %259 by %c32_i32_139 dim 1 : vector<8x128xf32>, i32 -> vector<8x128xf32>
    %263 = arith.mulf %260, %245 : vector<8x128xf32>
    %264 = arith.mulf %259, %261 : vector<8x128xf32>
    %265 = arith.addf %263, %264 : vector<8x128xf32>
    %266 = math.tanh %265 : vector<8x128xf32>
    %267 = arith.mulf %262, %266 : vector<8x128xf32>
    %c3_i32_140 = arith.constant 3 : i32
    %268 = arith.muli %arg0, %c3_i32_140 : i32
    %269 = arith.addi %268, %c0_i32_132 : i32
    %c8_i32_141 = arith.constant 8 : i32
    %270 = arith.cmpi slt, %269, %c8_i32_141 : i32
    %271 = arith.select %270, %267, %243 : vector<8x128xf32>
    %272 = arith.select %270, %265, %245 : vector<8x128xf32>
    %273 = arith.truncf %271 : vector<8x128xf32> to vector<8x128xbf16>
    %274 = arith.index_cast %247 : i32 to index
    %c0_142 = arith.constant 0 : index
    %275 = vector.load %arg12[%274, %c0_142] : memref<24x128xbf16, #tpu.memory_space<vmem>>, vector<8x128xbf16>
    tpu.vector_store %arg12[%274, %c0_142], %273 {strides = array<i32>} : memref<24x128xbf16, #tpu.memory_space<vmem>>, vector<8x128xbf16>,
    %c1_i32_143 = arith.constant 1 : i32
    %c8_i32_144 = arith.constant 8 : i32
    %276 = arith.muli %c1_i32_143, %c8_i32_144 : i32
    %277 = tpu.assume_multiple %276, 8 : i32
    %278 = arith.index_cast %277 : i32 to index
    %c0_145 = arith.constant 0 : index
    %279 = vector.load %arg13[%278, %c0_145] : memref<24x128xf32, #tpu.memory_space<vmem>>, vector<8x128xf32>
    %280 = arith.truncf %271 : vector<8x128xf32> to vector<8x128xbf16>
    %cst_146 = arith.constant dense<0.000000e+00> : vector<8x128xf32>
    %281 = tpu.matmul %280, %241, %cst_146 {dimension_numbers = #tpu.dot_dimension_numbers<[1], [0], [0], [1], [0, 0, 1, 1], [], []>} : vector<8x128xbf16>, vector<128x128xbf16>, vector<8x128xf32> -> vector<8x128xf32>
    %282 = arith.addf %279, %281 : vector<8x128xf32>
    %283 = math.tanh %282 : vector<8x128xf32>
    %284 = arith.negf %282 : vector<8x128xf32>
    %285 = math.exp %284 : vector<8x128xf32>
    %cst_147 = arith.constant 1.000000e+00 : f32
    %286 = vector.broadcast %cst_147 : f32 to vector<8x128xf32>
    %287 = arith.addf %286, %285 : vector<8x128xf32>
    %288 = arith.divf %286, %287 : vector<8x128xf32>
    %289 = arith.select %8, %283, %288 : vector<8x128xi1>, vector<8x128xf32>
    %c96_i32_148 = arith.constant 96 : i32
    %290 = tpu.dynamic_rotate %289 by %c96_i32_148 dim 1 : vector<8x128xf32>, i32 -> vector<8x128xf32>
    %c64_i32_149 = arith.constant 64 : i32
    %291 = tpu.dynamic_rotate %289 by %c64_i32_149 dim 1 : vector<8x128xf32>, i32 -> vector<8x128xf32>
    %c32_i32_150 = arith.constant 32 : i32
    %292 = tpu.dynamic_rotate %289 by %c32_i32_150 dim 1 : vector<8x128xf32>, i32 -> vector<8x128xf32>
    %293 = arith.mulf %290, %272 : vector<8x128xf32>
    %294 = arith.mulf %289, %291 : vector<8x128xf32>
    %295 = arith.addf %293, %294 : vector<8x128xf32>
    %296 = math.tanh %295 : vector<8x128xf32>
    %297 = arith.mulf %292, %296 : vector<8x128xf32>
    %c3_i32_151 = arith.constant 3 : i32
    %298 = arith.muli %arg0, %c3_i32_151 : i32
    %299 = arith.addi %298, %c1_i32_143 : i32
    %c8_i32_152 = arith.constant 8 : i32
    %300 = arith.cmpi slt, %299, %c8_i32_152 : i32
    %301 = arith.select %300, %297, %271 : vector<8x128xf32>
    %302 = arith.select %300, %295, %272 : vector<8x128xf32>
    %303 = arith.truncf %301 : vector<8x128xf32> to vector<8x128xbf16>
    %304 = arith.index_cast %277 : i32 to index
    %c0_153 = arith.constant 0 : index
    %305 = vector.load %arg12[%304, %c0_153] : memref<24x128xbf16, #tpu.memory_space<vmem>>, vector<8x128xbf16>
    tpu.vector_store %arg12[%304, %c0_153], %303 {strides = array<i32>} : memref<24x128xbf16, #tpu.memory_space<vmem>>, vector<8x128xbf16>,
    %c2_i32_154 = arith.constant 2 : i32
    %c8_i32_155 = arith.constant 8 : i32
    %306 = arith.muli %c2_i32_154, %c8_i32_155 : i32
    %307 = tpu.assume_multiple %306, 8 : i32
    %308 = arith.index_cast %307 : i32 to index
    %c0_156 = arith.constant 0 : index
    %309 = vector.load %arg13[%308, %c0_156] : memref<24x128xf32, #tpu.memory_space<vmem>>, vector<8x128xf32>
    %310 = arith.truncf %301 : vector<8x128xf32> to vector<8x128xbf16>
    %cst_157 = arith.constant dense<0.000000e+00> : vector<8x128xf32>
    %311 = tpu.matmul %310, %241, %cst_157 {dimension_numbers = #tpu.dot_dimension_numbers<[1], [0], [0], [1], [0, 0, 1, 1], [], []>} : vector<8x128xbf16>, vector<128x128xbf16>, vector<8x128xf32> -> vector<8x128xf32>
    %312 = arith.addf %309, %311 : vector<8x128xf32>
    %313 = math.tanh %312 : vector<8x128xf32>
    %314 = arith.negf %312 : vector<8x128xf32>
    %315 = math.exp %314 : vector<8x128xf32>
    %cst_158 = arith.constant 1.000000e+00 : f32
    %316 = vector.broadcast %cst_158 : f32 to vector<8x128xf32>
    %317 = arith.addf %316, %315 : vector<8x128xf32>
    %318 = arith.divf %316, %317 : vector<8x128xf32>
    %319 = arith.select %8, %313, %318 : vector<8x128xi1>, vector<8x128xf32>
    %c96_i32_159 = arith.constant 96 : i32
    %320 = tpu.dynamic_rotate %319 by %c96_i32_159 dim 1 : vector<8x128xf32>, i32 -> vector<8x128xf32>
    %c64_i32_160 = arith.constant 64 : i32
    %321 = tpu.dynamic_rotate %319 by %c64_i32_160 dim 1 : vector<8x128xf32>, i32 -> vector<8x128xf32>
    %c32_i32_161 = arith.constant 32 : i32
    %322 = tpu.dynamic_rotate %319 by %c32_i32_161 dim 1 : vector<8x128xf32>, i32 -> vector<8x128xf32>
    %323 = arith.mulf %320, %302 : vector<8x128xf32>
    %324 = arith.mulf %319, %321 : vector<8x128xf32>
    %325 = arith.addf %323, %324 : vector<8x128xf32>
    %326 = math.tanh %325 : vector<8x128xf32>
    %327 = arith.mulf %322, %326 : vector<8x128xf32>
    %c3_i32_162 = arith.constant 3 : i32
    %328 = arith.muli %arg0, %c3_i32_162 : i32
    %329 = arith.addi %328, %c2_i32_154 : i32
    %c8_i32_163 = arith.constant 8 : i32
    %330 = arith.cmpi slt, %329, %c8_i32_163 : i32
    %331 = arith.select %330, %327, %301 : vector<8x128xf32>
    %332 = arith.select %330, %325, %302 : vector<8x128xf32>
    %333 = arith.truncf %331 : vector<8x128xf32> to vector<8x128xbf16>
    %334 = arith.index_cast %307 : i32 to index
    %c0_164 = arith.constant 0 : index
    %335 = vector.load %arg12[%334, %c0_164] : memref<24x128xbf16, #tpu.memory_space<vmem>>, vector<8x128xbf16>
    tpu.vector_store %arg12[%334, %c0_164], %333 {strides = array<i32>} : memref<24x128xbf16, #tpu.memory_space<vmem>>, vector<8x128xbf16>,
    %c3_i32_165 = arith.constant 3 : i32
    %c2_166 = arith.constant 2 : index
    %c0_167 = arith.constant 0 : index
    %c0_168 = arith.constant 0 : index
    %336 = vector.load %arg10[%c2_166, %c0_167, %c0_168] : memref<4x8x128xf32, #tpu.memory_space<vmem>>, vector<1x8x128xf32>
    %337 = vector.shape_cast %336 : vector<1x8x128xf32> to vector<8x128xf32>
    %338 = vector.shape_cast %331 : vector<8x128xf32> to vector<1x8x128xf32>
    tpu.vector_store %arg10[%c2_166, %c0_167, %c0_168], %338 {strides = array<i32>} : memref<4x8x128xf32, #tpu.memory_space<vmem>>, vector<1x8x128xf32>,
    %c2_169 = arith.constant 2 : index
    %c0_170 = arith.constant 0 : index
    %c0_171 = arith.constant 0 : index
    %339 = vector.load %arg11[%c2_169, %c0_170, %c0_171] : memref<4x8x128xf32, #tpu.memory_space<vmem>>, vector<1x8x128xf32>
    %340 = vector.shape_cast %339 : vector<1x8x128xf32> to vector<8x128xf32>
    %341 = vector.shape_cast %332 : vector<8x128xf32> to vector<1x8x128xf32>
    tpu.vector_store %arg11[%c2_169, %c0_170, %c0_171], %341 {strides = array<i32>} : memref<4x8x128xf32, #tpu.memory_space<vmem>>, vector<1x8x128xf32>,
    %c0_172 = arith.constant 0 : index
    %c0_173 = arith.constant 0 : index
    %342 = vector.load %arg12[%c0_172, %c0_173] : memref<24x128xbf16, #tpu.memory_space<vmem>>, vector<24x128xbf16>
    %c3 = arith.constant 3 : index
    %c0_174 = arith.constant 0 : index
    %c0_175 = arith.constant 0 : index
    %343 = vector.load %arg2[%c3, %c0_174, %c0_175] : memref<4x128x128xbf16, #tpu.memory_space<vmem>>, vector<1x128x128xbf16>
    %344 = vector.shape_cast %343 : vector<1x128x128xbf16> to vector<128x128xbf16>
    %cst_176 = arith.constant dense<0.000000e+00> : vector<24x128xf32>
    %345 = tpu.matmul %342, %344, %cst_176 {dimension_numbers = #tpu.dot_dimension_numbers<[1], [0], [0], [1], [0, 0, 1, 1], [], []>} : vector<24x128xbf16>, vector<128x128xbf16>, vector<24x128xf32> -> vector<24x128xf32>
    %c3_177 = arith.constant 3 : index
    %c0_178 = arith.constant 0 : index
    %c0_179 = arith.constant 0 : index
    %346 = vector.load %arg4[%c3_177, %c0_178, %c0_179] : memref<4x1x128xf32, #tpu.memory_space<vmem>>, vector<1x1x128xf32>
    %347 = vector.shape_cast %346 : vector<1x1x128xf32> to vector<1x128xf32>
    %348 = vector.broadcast %347 : vector<1x128xf32> to vector<24x128xf32>
    %349 = arith.addf %345, %348 : vector<24x128xf32>
    %c0_180 = arith.constant 0 : index
    %c0_181 = arith.constant 0 : index
    %350 = vector.load %arg13[%c0_180, %c0_181] : memref<24x128xf32, #tpu.memory_space<vmem>>, vector<24x128xf32>
    tpu.vector_store %arg13[%c0_180, %c0_181], %349 {strides = array<i32>} : memref<24x128xf32, #tpu.memory_space<vmem>>, vector<24x128xf32>,
    %c3_182 = arith.constant 3 : index
    %c0_183 = arith.constant 0 : index
    %c0_184 = arith.constant 0 : index
    %351 = vector.load %arg3[%c3_182, %c0_183, %c0_184] : memref<4x128x128xbf16, #tpu.memory_space<vmem>>, vector<1x128x128xbf16>
    %352 = vector.shape_cast %351 : vector<1x128x128xbf16> to vector<128x128xbf16>
    %c3_185 = arith.constant 3 : index
    %c0_186 = arith.constant 0 : index
    %c0_187 = arith.constant 0 : index
    %353 = vector.load %arg10[%c3_185, %c0_186, %c0_187] : memref<4x8x128xf32, #tpu.memory_space<vmem>>, vector<1x8x128xf32>
    %354 = vector.shape_cast %353 : vector<1x8x128xf32> to vector<8x128xf32>
    %c3_188 = arith.constant 3 : index
    %c0_189 = arith.constant 0 : index
    %c0_190 = arith.constant 0 : index
    %355 = vector.load %arg11[%c3_188, %c0_189, %c0_190] : memref<4x8x128xf32, #tpu.memory_space<vmem>>, vector<1x8x128xf32>
    %356 = vector.shape_cast %355 : vector<1x8x128xf32> to vector<8x128xf32>
    %c0_i32_191 = arith.constant 0 : i32
    %c8_i32_192 = arith.constant 8 : i32
    %357 = arith.muli %c0_i32_191, %c8_i32_192 : i32
    %358 = tpu.assume_multiple %357, 8 : i32
    %359 = arith.index_cast %358 : i32 to index
    %c0_193 = arith.constant 0 : index
    %360 = vector.load %arg13[%359, %c0_193] : memref<24x128xf32, #tpu.memory_space<vmem>>, vector<8x128xf32>
    %361 = arith.truncf %354 : vector<8x128xf32> to vector<8x128xbf16>
    %cst_194 = arith.constant dense<0.000000e+00> : vector<8x128xf32>
    %362 = tpu.matmul %361, %352, %cst_194 {dimension_numbers = #tpu.dot_dimension_numbers<[1], [0], [0], [1], [0, 0, 1, 1], [], []>} : vector<8x128xbf16>, vector<128x128xbf16>, vector<8x128xf32> -> vector<8x128xf32>
    %363 = arith.addf %360, %362 : vector<8x128xf32>
    %364 = math.tanh %363 : vector<8x128xf32>
    %365 = arith.negf %363 : vector<8x128xf32>
    %366 = math.exp %365 : vector<8x128xf32>
    %cst_195 = arith.constant 1.000000e+00 : f32
    %367 = vector.broadcast %cst_195 : f32 to vector<8x128xf32>
    %368 = arith.addf %367, %366 : vector<8x128xf32>
    %369 = arith.divf %367, %368 : vector<8x128xf32>
    %370 = arith.select %8, %364, %369 : vector<8x128xi1>, vector<8x128xf32>
    %c96_i32_196 = arith.constant 96 : i32
    %371 = tpu.dynamic_rotate %370 by %c96_i32_196 dim 1 : vector<8x128xf32>, i32 -> vector<8x128xf32>
    %c64_i32_197 = arith.constant 64 : i32
    %372 = tpu.dynamic_rotate %370 by %c64_i32_197 dim 1 : vector<8x128xf32>, i32 -> vector<8x128xf32>
    %c32_i32_198 = arith.constant 32 : i32
    %373 = tpu.dynamic_rotate %370 by %c32_i32_198 dim 1 : vector<8x128xf32>, i32 -> vector<8x128xf32>
    %374 = arith.mulf %371, %356 : vector<8x128xf32>
    %375 = arith.mulf %370, %372 : vector<8x128xf32>
    %376 = arith.addf %374, %375 : vector<8x128xf32>
    %377 = math.tanh %376 : vector<8x128xf32>
    %378 = arith.mulf %373, %377 : vector<8x128xf32>
    %c3_i32_199 = arith.constant 3 : i32
    %379 = arith.muli %arg0, %c3_i32_199 : i32
    %380 = arith.addi %379, %c0_i32_191 : i32
    %c8_i32_200 = arith.constant 8 : i32
    %381 = arith.cmpi slt, %380, %c8_i32_200 : i32
    %382 = arith.select %381, %378, %354 : vector<8x128xf32>
    %383 = arith.select %381, %376, %356 : vector<8x128xf32>
    %384 = arith.truncf %382 : vector<8x128xf32> to vector<8x128xbf16>
    %385 = arith.index_cast %358 : i32 to index
    %c0_201 = arith.constant 0 : index
    %386 = vector.load %arg12[%385, %c0_201] : memref<24x128xbf16, #tpu.memory_space<vmem>>, vector<8x128xbf16>
    tpu.vector_store %arg12[%385, %c0_201], %384 {strides = array<i32>} : memref<24x128xbf16, #tpu.memory_space<vmem>>, vector<8x128xbf16>,
    %c1_i32_202 = arith.constant 1 : i32
    %c8_i32_203 = arith.constant 8 : i32
    %387 = arith.muli %c1_i32_202, %c8_i32_203 : i32
    %388 = tpu.assume_multiple %387, 8 : i32
    %389 = arith.index_cast %388 : i32 to index
    %c0_204 = arith.constant 0 : index
    %390 = vector.load %arg13[%389, %c0_204] : memref<24x128xf32, #tpu.memory_space<vmem>>, vector<8x128xf32>
    %391 = arith.truncf %382 : vector<8x128xf32> to vector<8x128xbf16>
    %cst_205 = arith.constant dense<0.000000e+00> : vector<8x128xf32>
    %392 = tpu.matmul %391, %352, %cst_205 {dimension_numbers = #tpu.dot_dimension_numbers<[1], [0], [0], [1], [0, 0, 1, 1], [], []>} : vector<8x128xbf16>, vector<128x128xbf16>, vector<8x128xf32> -> vector<8x128xf32>
    %393 = arith.addf %390, %392 : vector<8x128xf32>
    %394 = math.tanh %393 : vector<8x128xf32>
    %395 = arith.negf %393 : vector<8x128xf32>
    %396 = math.exp %395 : vector<8x128xf32>
    %cst_206 = arith.constant 1.000000e+00 : f32
    %397 = vector.broadcast %cst_206 : f32 to vector<8x128xf32>
    %398 = arith.addf %397, %396 : vector<8x128xf32>
    %399 = arith.divf %397, %398 : vector<8x128xf32>
    %400 = arith.select %8, %394, %399 : vector<8x128xi1>, vector<8x128xf32>
    %c96_i32_207 = arith.constant 96 : i32
    %401 = tpu.dynamic_rotate %400 by %c96_i32_207 dim 1 : vector<8x128xf32>, i32 -> vector<8x128xf32>
    %c64_i32_208 = arith.constant 64 : i32
    %402 = tpu.dynamic_rotate %400 by %c64_i32_208 dim 1 : vector<8x128xf32>, i32 -> vector<8x128xf32>
    %c32_i32_209 = arith.constant 32 : i32
    %403 = tpu.dynamic_rotate %400 by %c32_i32_209 dim 1 : vector<8x128xf32>, i32 -> vector<8x128xf32>
    %404 = arith.mulf %401, %383 : vector<8x128xf32>
    %405 = arith.mulf %400, %402 : vector<8x128xf32>
    %406 = arith.addf %404, %405 : vector<8x128xf32>
    %407 = math.tanh %406 : vector<8x128xf32>
    %408 = arith.mulf %403, %407 : vector<8x128xf32>
    %c3_i32_210 = arith.constant 3 : i32
    %409 = arith.muli %arg0, %c3_i32_210 : i32
    %410 = arith.addi %409, %c1_i32_202 : i32
    %c8_i32_211 = arith.constant 8 : i32
    %411 = arith.cmpi slt, %410, %c8_i32_211 : i32
    %412 = arith.select %411, %408, %382 : vector<8x128xf32>
    %413 = arith.select %411, %406, %383 : vector<8x128xf32>
    %414 = arith.truncf %412 : vector<8x128xf32> to vector<8x128xbf16>
    %415 = arith.index_cast %388 : i32 to index
    %c0_212 = arith.constant 0 : index
    %416 = vector.load %arg12[%415, %c0_212] : memref<24x128xbf16, #tpu.memory_space<vmem>>, vector<8x128xbf16>
    tpu.vector_store %arg12[%415, %c0_212], %414 {strides = array<i32>} : memref<24x128xbf16, #tpu.memory_space<vmem>>, vector<8x128xbf16>,
    %c2_i32_213 = arith.constant 2 : i32
    %c8_i32_214 = arith.constant 8 : i32
    %417 = arith.muli %c2_i32_213, %c8_i32_214 : i32
    %418 = tpu.assume_multiple %417, 8 : i32
    %419 = arith.index_cast %418 : i32 to index
    %c0_215 = arith.constant 0 : index
    %420 = vector.load %arg13[%419, %c0_215] : memref<24x128xf32, #tpu.memory_space<vmem>>, vector<8x128xf32>
    %421 = arith.truncf %412 : vector<8x128xf32> to vector<8x128xbf16>
    %cst_216 = arith.constant dense<0.000000e+00> : vector<8x128xf32>
    %422 = tpu.matmul %421, %352, %cst_216 {dimension_numbers = #tpu.dot_dimension_numbers<[1], [0], [0], [1], [0, 0, 1, 1], [], []>} : vector<8x128xbf16>, vector<128x128xbf16>, vector<8x128xf32> -> vector<8x128xf32>
    %423 = arith.addf %420, %422 : vector<8x128xf32>
    %424 = math.tanh %423 : vector<8x128xf32>
    %425 = arith.negf %423 : vector<8x128xf32>
    %426 = math.exp %425 : vector<8x128xf32>
    %cst_217 = arith.constant 1.000000e+00 : f32
    %427 = vector.broadcast %cst_217 : f32 to vector<8x128xf32>
    %428 = arith.addf %427, %426 : vector<8x128xf32>
    %429 = arith.divf %427, %428 : vector<8x128xf32>
    %430 = arith.select %8, %424, %429 : vector<8x128xi1>, vector<8x128xf32>
    %c96_i32_218 = arith.constant 96 : i32
    %431 = tpu.dynamic_rotate %430 by %c96_i32_218 dim 1 : vector<8x128xf32>, i32 -> vector<8x128xf32>
    %c64_i32_219 = arith.constant 64 : i32
    %432 = tpu.dynamic_rotate %430 by %c64_i32_219 dim 1 : vector<8x128xf32>, i32 -> vector<8x128xf32>
    %c32_i32_220 = arith.constant 32 : i32
    %433 = tpu.dynamic_rotate %430 by %c32_i32_220 dim 1 : vector<8x128xf32>, i32 -> vector<8x128xf32>
    %434 = arith.mulf %431, %413 : vector<8x128xf32>
    %435 = arith.mulf %430, %432 : vector<8x128xf32>
    %436 = arith.addf %434, %435 : vector<8x128xf32>
    %437 = math.tanh %436 : vector<8x128xf32>
    %438 = arith.mulf %433, %437 : vector<8x128xf32>
    %c3_i32_221 = arith.constant 3 : i32
    %439 = arith.muli %arg0, %c3_i32_221 : i32
    %440 = arith.addi %439, %c2_i32_213 : i32
    %c8_i32_222 = arith.constant 8 : i32
    %441 = arith.cmpi slt, %440, %c8_i32_222 : i32
    %442 = arith.select %441, %438, %412 : vector<8x128xf32>
    %443 = arith.select %441, %436, %413 : vector<8x128xf32>
    %444 = arith.truncf %442 : vector<8x128xf32> to vector<8x128xbf16>
    %445 = arith.index_cast %418 : i32 to index
    %c0_223 = arith.constant 0 : index
    %446 = vector.load %arg12[%445, %c0_223] : memref<24x128xbf16, #tpu.memory_space<vmem>>, vector<8x128xbf16>
    tpu.vector_store %arg12[%445, %c0_223], %444 {strides = array<i32>} : memref<24x128xbf16, #tpu.memory_space<vmem>>, vector<8x128xbf16>,
    %c3_i32_224 = arith.constant 3 : i32
    %c3_225 = arith.constant 3 : index
    %c0_226 = arith.constant 0 : index
    %c0_227 = arith.constant 0 : index
    %447 = vector.load %arg10[%c3_225, %c0_226, %c0_227] : memref<4x8x128xf32, #tpu.memory_space<vmem>>, vector<1x8x128xf32>
    %448 = vector.shape_cast %447 : vector<1x8x128xf32> to vector<8x128xf32>
    %449 = vector.shape_cast %442 : vector<8x128xf32> to vector<1x8x128xf32>
    tpu.vector_store %arg10[%c3_225, %c0_226, %c0_227], %449 {strides = array<i32>} : memref<4x8x128xf32, #tpu.memory_space<vmem>>, vector<1x8x128xf32>,
    %c3_228 = arith.constant 3 : index
    %c0_229 = arith.constant 0 : index
    %c0_230 = arith.constant 0 : index
    %450 = vector.load %arg11[%c3_228, %c0_229, %c0_230] : memref<4x8x128xf32, #tpu.memory_space<vmem>>, vector<1x8x128xf32>
    %451 = vector.shape_cast %450 : vector<1x8x128xf32> to vector<8x128xf32>
    %452 = vector.shape_cast %443 : vector<8x128xf32> to vector<1x8x128xf32>
    tpu.vector_store %arg11[%c3_228, %c0_229, %c0_230], %452 {strides = array<i32>} : memref<4x8x128xf32, #tpu.memory_space<vmem>>, vector<1x8x128xf32>,
    %c0_231 = arith.constant 0 : index
    %c0_232 = arith.constant 0 : index
    %453 = vector.load %arg12[%c0_231, %c0_232] : memref<24x128xbf16, #tpu.memory_space<vmem>>, vector<24x128xbf16>
    %c0_233 = arith.constant 0 : index
    %c0_234 = arith.constant 0 : index
    %454 = vector.load %arg7[%c0_233, %c0_234] : memref<24x128xbf16, #tpu.memory_space<vmem>>, vector<24x128xbf16>
    tpu.vector_store %arg7[%c0_233, %c0_234], %453 {strides = array<i32>} : memref<24x128xbf16, #tpu.memory_space<vmem>>, vector<24x128xbf16>,
    %c0_235 = arith.constant 0 : index
    %c0_236 = arith.constant 0 : index
    %c0_237 = arith.constant 0 : index
    %455 = vector.load %arg10[%c0_235, %c0_236, %c0_237] : memref<4x8x128xf32, #tpu.memory_space<vmem>>, vector<4x8x128xf32>
    %c0_238 = arith.constant 0 : index
    %c0_239 = arith.constant 0 : index
    %c0_240 = arith.constant 0 : index
    %456 = vector.load %arg8[%c0_238, %c0_239, %c0_240] : memref<4x8x128xf32, #tpu.memory_space<vmem>>, vector<4x8x128xf32>
    tpu.vector_store %arg8[%c0_238, %c0_239, %c0_240], %455 {strides = array<i32>} : memref<4x8x128xf32, #tpu.memory_space<vmem>>, vector<4x8x128xf32>,
    %c0_241 = arith.constant 0 : index
    %c0_242 = arith.constant 0 : index
    %c0_243 = arith.constant 0 : index
    %457 = vector.load %arg11[%c0_241, %c0_242, %c0_243] : memref<4x8x128xf32, #tpu.memory_space<vmem>>, vector<4x8x128xf32>
    %c0_244 = arith.constant 0 : index
    %c0_245 = arith.constant 0 : index
    %c0_246 = arith.constant 0 : index
    %458 = vector.load %arg9[%c0_244, %c0_245, %c0_246] : memref<4x8x128xf32, #tpu.memory_space<vmem>>, vector<4x8x128xf32>
    tpu.vector_store %arg9[%c0_244, %c0_245, %c0_246], %457 {strides = array<i32>} : memref<4x8x128xf32, #tpu.memory_space<vmem>>, vector<4x8x128xf32>,
    return
  }
  func.func @transform_0(%arg0: i32) -> (i32, i32) {
    %c0_i32 = arith.constant 0 : i32
    %c0_i32_0 = arith.constant 0 : i32
    return %arg0, %c0_i32 : i32, i32
  }
  func.func @transform_1(%arg0: i32) -> (i32, i32, i32) {
    %c0_i32 = arith.constant 0 : i32
    %c0_i32_0 = arith.constant 0 : i32
    %c0_i32_1 = arith.constant 0 : i32
    %c0_i32_2 = arith.constant 0 : i32
    return %c0_i32, %c0_i32_0, %c0_i32_1 : i32, i32, i32
  }
  func.func @transform_2(%arg0: i32) -> (i32, i32, i32) {
    %c0_i32 = arith.constant 0 : i32
    %c0_i32_0 = arith.constant 0 : i32
    %c0_i32_1 = arith.constant 0 : i32
    %c0_i32_2 = arith.constant 0 : i32
    return %c0_i32, %c0_i32_0, %c0_i32_1 : i32, i32, i32
  }
  func.func @transform_3(%arg0: i32) -> (i32, i32, i32) {
    %c0_i32 = arith.constant 0 : i32
    %c0_i32_0 = arith.constant 0 : i32
    %c0_i32_1 = arith.constant 0 : i32
    %c0_i32_2 = arith.constant 0 : i32
    return %c0_i32, %c0_i32_0, %c0_i32_1 : i32, i32, i32
  }
  func.func @transform_4(%arg0: i32) -> (i32, i32, i32) {
    %c0_i32 = arith.constant 0 : i32
    %c0_i32_0 = arith.constant 0 : i32
    %c0_i32_1 = arith.constant 0 : i32
    %c0_i32_2 = arith.constant 0 : i32
    return %c0_i32, %c0_i32_0, %c0_i32_1 : i32, i32, i32
  }
  func.func @transform_5(%arg0: i32) -> (i32, i32, i32) {
    %c0_i32 = arith.constant 0 : i32
    %c0_i32_0 = arith.constant 0 : i32
    %c0_i32_1 = arith.constant 0 : i32
    %c0_i32_2 = arith.constant 0 : i32
    return %c0_i32, %c0_i32_0, %c0_i32_1 : i32, i32, i32
  }
  func.func @transform_6(%arg0: i32) -> (i32, i32) {
    %c0_i32 = arith.constant 0 : i32
    %c0_i32_0 = arith.constant 0 : i32
    return %arg0, %c0_i32 : i32, i32
  }
  func.func @transform_7(%arg0: i32) -> (i32, i32, i32) {
    %c0_i32 = arith.constant 0 : i32
    %c0_i32_0 = arith.constant 0 : i32
    %c0_i32_1 = arith.constant 0 : i32
    %c0_i32_2 = arith.constant 0 : i32
    return %c0_i32, %c0_i32_0, %c0_i32_1 : i32, i32, i32
  }
  func.func @transform_8(%arg0: i32) -> (i32, i32, i32) {
    %c0_i32 = arith.constant 0 : i32
    %c0_i32_0 = arith.constant 0 : i32
    %c0_i32_1 = arith.constant 0 : i32
    %c0_i32_2 = arith.constant 0 : i32
    return %c0_i32, %c0_i32_0, %c0_i32_1 : i32, i32, i32
  }
}

</mosaic_0001>

<llo_original>
// kernel: tpu_custom_call.1
$region0: #{tpu_custom_call.1}
  #allocation0 [shape = 'u32[]', space=smem, size = 0x4, offset = 0x4, fixed_abs, tag = 'smem constant byte address 0x4 - core index']
  #allocation1 [shape = 'u32[72,128]{1,0:T(1,128)}', space=vmem, size = 0x9000, scoped, tag = 'internal scratch']
  #allocation2 [shape = 'f32[4,8,128]{2,1,0:T(8,128)}', space=vmem, size = 0x4000, scoped, tag = 'scratch operand']
  #allocation3 [shape = 'f32[4,8,128]{2,1,0:T(8,128)}', space=vmem, size = 0x4000, scoped, tag = 'scratch operand']
  #allocation4 [shape = 'bf16[24,128]{1,0:T(8,128)(2,1)}', space=vmem, size = 0x1800, scoped, tag = 'scratch operand']
  #allocation5 [shape = 'f32[24,128]{1,0:T(8,128)}', space=vmem, size = 0x3000, scoped, tag = 'scratch operand']
  %s0 = inlined_call_operand.hbm [shape: bf16[72,128], index: 0, kind: input, shape index: {}]
  %s1 = inlined_call_operand.hbm [shape: bf16[4,128,128], index: 1, kind: input, shape index: {}]
  %s2 = inlined_call_operand.hbm [shape: bf16[4,128,128], index: 2, kind: input, shape index: {}]
  %s3 = inlined_call_operand.hbm [shape: f32[4,1,128], index: 3, kind: input, shape index: {}]
  %s4 = inlined_call_operand.hbm [shape: f32[4,8,128], index: 4, kind: input, shape index: {}]
  %s5 = inlined_call_operand.hbm [shape: f32[4,8,128], index: 5, kind: input, shape index: {}]
  %s6 = inlined_call_operand.hbm [shape: bf16[72,128], index: 6, kind: output, shape index: {0}]
  %s7 = inlined_call_operand.hbm [shape: f32[4,8,128], index: 7, kind: output, shape index: {1}]
  %s8 = inlined_call_operand.hbm [shape: f32[4,8,128], index: 8, kind: output, shape index: {2}]
  %9 = xla_tuple %s6, %s7, %s8
  %s10 = sld [smem:[#allocation0]]
  $region101: #{tpu_custom_call.1} parent=0
    _
  %s12 = ssub.s32 1, %s10
  %s13 = scalar_select 0, %s12, %s10
  $region1: #{tpu_custom_call.1} parent=0
    #allocation6 [shape = 'u8[12288]{0}', space=vmem, size = 0x3000, scoped, tag = 'input window, operand 0']
    #allocation7 [shape = 's32[2]{0}', space=sflag, size = 0x8, scoped, tag = 'scoped memory for tpu_custom_call.1']
    #allocation8 [shape = 's32[2]{0}', space=sflag, size = 0x8, scoped, tag = 'scoped memory for tpu_custom_call.1']
    #allocation9 [shape = 'u8[131072]{0}', space=vmem, size = 0x20000, scoped, tag = 'input window, operand 1, single buffered']
    #allocation10 [shape = 's32[1]{0}', space=sflag, size = 0x4, scoped, tag = 'scoped memory for tpu_custom_call.1']
    #allocation11 [shape = 'u8[131072]{0}', space=vmem, size = 0x20000, scoped, tag = 'input window, operand 2, single buffered']
    #allocation12 [shape = 'u8[2048]{0}', space=vmem, size = 0x800, scoped, tag = 'input window, operand 3, single buffered']
    #allocation13 [shape = 's32[1]{0}', space=sflag, size = 0x4, scoped, tag = 'scoped memory for tpu_custom_call.1']
    #allocation14 [shape = 'u8[16384]{0}', space=vmem, size = 0x4000, scoped, tag = 'input window, operand 4, single buffered']
    #allocation15 [shape = 'u8[16384]{0}', space=vmem, size = 0x4000, scoped, tag = 'input window, operand 5, single buffered']
    #allocation16 [shape = 's32[1]{0}', space=sflag, size = 0x4, scoped, tag = 'scoped memory for tpu_custom_call.1']
    #allocation17 [shape = 'u8[12288]{0}', space=vmem, size = 0x3000, scoped, tag = 'output window, operand 0']
    #allocation18 [shape = 'u8[16384]{0}', space=vmem, size = 0x4000, scoped, tag = 'output window, operand 1, single buffered']
    #allocation19 [shape = 's32[1]{0}', space=sflag, size = 0x4, scoped, tag = 'scoped memory for tpu_custom_call.1']
    #allocation20 [shape = 'u8[16384]{0}', space=vmem, size = 0x4000, scoped, tag = 'output window, operand 2, single buffered']
    %14 = vsyncpa [#allocation7], 0
    %s15 = scalar_lea.sflag [#allocation7], 1
    %16 = vsyncpa %s15, 0
    %17 = vsyncpa [#allocation10], 0
    %18 = vsyncpa [#allocation13], 0
    %19 = vsyncpa [#allocation16], 0
    %20 = vsyncpa [#allocation8], 0
    %s21 = scalar_lea.sflag [#allocation8], 1
    %22 = vsyncpa %s21, 0
    %23 = vsyncpa [#allocation19], 0
    loop: start=0, step=1, limit=5
    $region2: #{tpu_custom_call.1} parent=1 // loop_pre_header
      _
    $region3: #{tpu_custom_call.1} parent=1 // loop_header
      %s25 = sphi 0, %s29
      %p26 = scmp.ge.s32.totalorder %s25, 5
      %s35 = sphi 0, %s37
      %s38 = sphi 0, %s35
      %s39 = sphi 0, %s38
      %s55 = sphi 0, %s39
      %s59 = sphi 0, %s59
      %s61 = sphi 0, %s59
      %s62 = sphi 0, %s61
      %s76 = sphi 0, %s62
      %s80 = sphi 0, %s80
      %s82 = sphi 0, %s80
      %s83 = sphi 0, %s82
      %s97 = sphi 0, %s83
      %s101 = sphi 0, %s101
      %s103 = sphi 0, %s101
      %s104 = sphi 0, %s103
      %s118 = sphi 0, %s104
      %s122 = sphi 0, %s122
      %s124 = sphi 0, %s122
      %s125 = sphi 0, %s124
      %s139 = sphi 0, %s125
      %s143 = sphi 0, %s143
      %s145 = sphi 0, %s143
      %s146 = sphi 0, %s145
      %s160 = sphi 0, %s146
      %s166 = sphi 0, %s168
      %s169 = sphi 0, %s166
      %s170 = sphi 0, %s169
      %s186 = sphi 0, %s170
      %s190 = sphi 0, %s190
      %s192 = sphi 0, %s190
      %s193 = sphi 0, %s192
      %s207 = sphi 0, %s193
      %s211 = sphi 0, %s211
      %s213 = sphi 0, %s211
      %s214 = sphi 0, %s213
      %s228 = sphi 0, %s214
    $region4: #{tpu_custom_call.1} parent=1 // loop_header_branch
      %28 = sbr.rel (%p26) target = $region8
    $region5: #{tpu_custom_call.1} parent=1 // loop_body
      %s30 = ssub.s32 %s25, 1
      %s31 = ssub.s32 %s25, 2
      %s32 = sadd.s32 %s25, 1
      %s33 = ssub.s32 %s25, %s32
      %p34 = scmp.eq.s32.totalorder %s33, 0
      %s36 = sadd.s32 %s35, 1
      %s37 = scalar_select %p34, %s35, %s36
      %p40 = pneg %p34
      %p41 = scmp.eq.s32.totalorder %s25, 2
      %p42 = por %p40, %p41
      %p43 = scmp.ne.s32.totalorder %s35, %s38
      %p44 = scmp.eq.s32.totalorder %s25, 0
      %p45 = por %p43, %p44
      %p46 = scmp.ne.s32.totalorder %s35, %s38
      %p47 = scmp.eq.s32.totalorder %s30, 2
      %p48 = por %p46, %p47
      %p49 = scmp.ne.s32.totalorder %s38, %s39
      %p50 = scmp.eq.s32.totalorder %s30, 0
      %p51 = por %p49, %p50
      %p52 = scmp.ne.s32.totalorder %s38, %s39
      %p53 = scmp.eq.s32.totalorder %s31, 2
      %p54 = por %p52, %p53
      %p56 = scmp.ne.s32.totalorder %s39, %s55
      %p57 = scmp.eq.s32.totalorder %s31, 0
      %p58 = por %p56, %p57
      %s60 = sadd.s32 %s59, 1
      %p63 = scmp.eq.s32.totalorder %s25, 2
      %p64 = scmp.ne.s32.totalorder %s59, %s61
      %p65 = scmp.eq.s32.totalorder %s25, 0
      %p66 = por %p64, %p65
      %p67 = scmp.ne.s32.totalorder %s59, %s61
      %p68 = scmp.eq.s32.totalorder %s30, 2
      %p69 = por %p67, %p68
      %p70 = scmp.ne.s32.totalorder %s61, %s62
      %p71 = scmp.eq.s32.totalorder %s30, 0
      %p72 = por %p70, %p71
      %p73 = scmp.ne.s32.totalorder %s61, %s62
      %p74 = scmp.eq.s32.totalorder %s31, 2
      %p75 = por %p73, %p74
      %p77 = scmp.ne.s32.totalorder %s62, %s76
      %p78 = scmp.eq.s32.totalorder %s31, 0
      %p79 = por %p77, %p78
      %s81 = sadd.s32 %s80, 1
      %p84 = scmp.eq.s32.totalorder %s25, 2
      %p85 = scmp.ne.s32.totalorder %s80, %s82
      %p86 = scmp.eq.s32.totalorder %s25, 0
      %p87 = por %p85, %p86
      %p88 = scmp.ne.s32.totalorder %s80, %s82
      %p89 = scmp.eq.s32.totalorder %s30, 2
      %p90 = por %p88, %p89
      %p91 = scmp.ne.s32.totalorder %s82, %s83
      %p92 = scmp.eq.s32.totalorder %s30, 0
      %p93 = por %p91, %p92
      %p94 = scmp.ne.s32.totalorder %s82, %s83
      %p95 = scmp.eq.s32.totalorder %s31, 2
      %p96 = por %p94, %p95
      %p98 = scmp.ne.s32.totalorder %s83, %s97
      %p99 = scmp.eq.s32.totalorder %s31, 0
      %p100 = por %p98, %p99
      %s102 = sadd.s32 %s101, 1
      %p105 = scmp.eq.s32.totalorder %s25, 2
      %p106 = scmp.ne.s32.totalorder %s101, %s103
      %p107 = scmp.eq.s32.totalorder %s25, 0
      %p108 = por %p106, %p107
      %p109 = scmp.ne.s32.totalorder %s101, %s103
      %p110 = scmp.eq.s32.totalorder %s30, 2
      %p111 = por %p109, %p110
      %p112 = scmp.ne.s32.totalorder %s103, %s104
      %p113 = scmp.eq.s32.totalorder %s30, 0
      %p114 = por %p112, %p113
      %p115 = scmp.ne.s32.totalorder %s103, %s104
      %p116 = scmp.eq.s32.totalorder %s31, 2
      %p117 = por %p115, %p116
      %p119 = scmp.ne.s32.totalorder %s104, %s118
      %p120 = scmp.eq.s32.totalorder %s31, 0
      %p121 = por %p119, %p120
      %s123 = sadd.s32 %s122, 1
      %p126 = scmp.eq.s32.totalorder %s25, 2
      %p127 = scmp.ne.s32.totalorder %s122, %s124
      %p128 = scmp.eq.s32.totalorder %s25, 0
      %p129 = por %p127, %p128
      %p130 = scmp.ne.s32.totalorder %s122, %s124
      %p131 = scmp.eq.s32.totalorder %s30, 2
      %p132 = por %p130, %p131
      %p133 = scmp.ne.s32.totalorder %s124, %s125
      %p134 = scmp.eq.s32.totalorder %s30, 0
      %p135 = por %p133, %p134
      %p136 = scmp.ne.s32.totalorder %s124, %s125
      %p137 = scmp.eq.s32.totalorder %s31, 2
      %p138 = por %p136, %p137
      %p140 = scmp.ne.s32.totalorder %s125, %s139
      %p141 = scmp.eq.s32.totalorder %s31, 0
      %p142 = por %p140, %p141
      %s144 = sadd.s32 %s143, 1
      %p147 = scmp.eq.s32.totalorder %s25, 2
      %p148 = scmp.ne.s32.totalorder %s143, %s145
      %p149 = scmp.eq.s32.totalorder %s25, 0
      %p150 = por %p148, %p149
      %p151 = scmp.ne.s32.totalorder %s143, %s145
      %p152 = scmp.eq.s32.totalorder %s30, 2
      %p153 = por %p151, %p152
      %p154 = scmp.ne.s32.totalorder %s145, %s146
      %p155 = scmp.eq.s32.totalorder %s30, 0
      %p156 = por %p154, %p155
      %p157 = scmp.ne.s32.totalorder %s145, %s146
      %p158 = scmp.eq.s32.totalorder %s31, 2
      %p159 = por %p157, %p158
      %p161 = scmp.ne.s32.totalorder %s146, %s160
      %p162 = scmp.eq.s32.totalorder %s31, 0
      %p163 = por %p161, %p162
      %s164 = ssub.s32 %s25, %s32
      %p165 = scmp.eq.s32.totalorder %s164, 0
      %s167 = sadd.s32 %s166, 1
      %s168 = scalar_select %p165, %s166, %s167
      %p171 = pneg %p165
      %p172 = scmp.eq.s32.totalorder %s25, 2
      %p173 = por %p171, %p172
      %p174 = scmp.ne.s32.totalorder %s166, %s169
      %p175 = scmp.eq.s32.totalorder %s25, 0
      %p176 = por %p174, %p175
      %p177 = scmp.ne.s32.totalorder %s166, %s169
      %p178 = scmp.eq.s32.totalorder %s30, 2
      %p179 = por %p177, %p178
      %p180 = scmp.ne.s32.totalorder %s169, %s170
      %p181 = scmp.eq.s32.totalorder %s30, 0
      %p182 = por %p180, %p181
      %p183 = scmp.ne.s32.totalorder %s169, %s170
      %p184 = scmp.eq.s32.totalorder %s31, 2
      %p185 = por %p183, %p184
      %p187 = scmp.ne.s32.totalorder %s170, %s186
      %p188 = scmp.eq.s32.totalorder %s31, 0
      %p189 = por %p187, %p188
      %s191 = sadd.s32 %s190, 1
      %p194 = scmp.eq.s32.totalorder %s25, 2
      %p195 = scmp.ne.s32.totalorder %s190, %s192
      %p196 = scmp.eq.s32.totalorder %s25, 0
      %p197 = por %p195, %p196
      %p198 = scmp.ne.s32.totalorder %s190, %s192
      %p199 = scmp.eq.s32.totalorder %s30, 2
      %p200 = por %p198, %p199
      %p201 = scmp.ne.s32.totalorder %s192, %s193
      %p202 = scmp.eq.s32.totalorder %s30, 0
      %p203 = por %p201, %p202
      %p204 = scmp.ne.s32.totalorder %s192, %s193
      %p205 = scmp.eq.s32.totalorder %s31, 2
      %p206 = por %p204, %p205
      %p208 = scmp.ne.s32.totalorder %s193, %s207
      %p209 = scmp.eq.s32.totalorder %s31, 0
      %p210 = por %p208, %p209
      %s212 = sadd.s32 %s211, 1
      %p215 = scmp.eq.s32.totalorder %s25, 2
      %p216 = scmp.ne.s32.totalorder %s211, %s213
      %p217 = scmp.eq.s32.totalorder %s25, 0
      %p218 = por %p216, %p217
      %p219 = scmp.ne.s32.totalorder %s211, %s213
      %p220 = scmp.eq.s32.totalorder %s30, 2
      %p221 = por %p219, %p220
      %p222 = scmp.ne.s32.totalorder %s213, %s214
      %p223 = scmp.eq.s32.totalorder %s30, 0
      %p224 = por %p222, %p223
      %p225 = scmp.ne.s32.totalorder %s213, %s214
      %p226 = scmp.eq.s32.totalorder %s31, 2
      %p227 = por %p225, %p226
      %p229 = scmp.ne.s32.totalorder %s214, %s228
      %p230 = scmp.eq.s32.totalorder %s31, 0
      %p231 = por %p229, %p230
      %p232 = scmp.le.s32.totalorder 1, %s25
      %p233 = scmp.lt.s32.totalorder %s25, 4
      %p234 = pnand %p232, %p233
      %p235 = pneg %p234
      // Predicated region
      $region9: #{tpu_custom_call.1} parent=5 // pred_check
        _
      $region10: #{tpu_custom_call.1} parent=5 // pred_check_branch
        %237 = sbr.rel (%p234) target = $region12
      $region11: #{tpu_custom_call.1} parent=5 // pred_region
        %s238 = ssub.s32 %s25, 1
        // Predicated region
        $region13: #{tpu_custom_call.1} parent=11 // pred_check
          %p239 = pneg %p72
        $region14: #{tpu_custom_call.1} parent=11 // pred_check_branch
          %241 = sbr.rel (%p239) target = $region16
        $region15: #{tpu_custom_call.1} parent=11 // pred_region
          %243 = vsyncadd [#allocation10], 0
          %s244 = sshll.u32 %s1, 4
          %s245 = int_to_ptr.hbm [resolvable:$true] %s244
          %s246 = sshll.u32 [#allocation9], 4
          %s247 = int_to_ptr.vmem [resolvable:$true] %s246
          %252 = dma.hbm_to_vmem [thread:$0]  %s245, 4096, %s247, [#allocation10], 64, 64, 4
        $region16: #{tpu_custom_call.1} parent=11 // pred_fallthru
          _
        // Predicated region
        $region17: #{tpu_custom_call.1} parent=11 // pred_check
          %p253 = pneg %p93
        $region18: #{tpu_custom_call.1} parent=11 // pred_check_branch
          %255 = sbr.rel (%p253) target = $region20
        $region19: #{tpu_custom_call.1} parent=11 // pred_region
          %257 = vsyncadd [#allocation10], 0
          %s258 = sshll.u32 %s2, 4
          %s259 = int_to_ptr.hbm [resolvable:$true] %s258
          %s260 = sshll.u32 [#allocation11], 4
          %s261 = int_to_ptr.vmem [resolvable:$true] %s260
          %266 = dma.hbm_to_vmem [thread:$0]  %s259, 4096, %s261, [#allocation10], 64, 64, 4
        $region20: #{tpu_custom_call.1} parent=11 // pred_fallthru
          _
        // Predicated region
        $region21: #{tpu_custom_call.1} parent=11 // pred_check
          %p267 = pneg %p114
        $region22: #{tpu_custom_call.1} parent=11 // pred_check_branch
          %269 = sbr.rel (%p267) target = $region24
        $region23: #{tpu_custom_call.1} parent=11 // pred_region
          %271 = vsyncadd [#allocation13], 0
          %s272 = sshll.u32 %s3, 4
          %s273 = int_to_ptr.hbm [resolvable:$true] %s272
          %s274 = sshll.u32 [#allocation12], 4
          %s275 = int_to_ptr.vmem [resolvable:$true] %s274
          %280 = dma.hbm_to_vmem [thread:$0]  %s273, 64, %s275, [#allocation13], 16, 16, 1
        $region24: #{tpu_custom_call.1} parent=11 // pred_fallthru
          _
        // Predicated region
        $region25: #{tpu_custom_call.1} parent=11 // pred_check
          %p281 = pneg %p135
        $region26: #{tpu_custom_call.1} parent=11 // pred_check_branch
          %283 = sbr.rel (%p281) target = $region28
        $region27: #{tpu_custom_call.1} parent=11 // pred_region
          %285 = vsyncadd [#allocation13], 0
          %s286 = sshll.u32 %s4, 4
          %s287 = int_to_ptr.hbm [resolvable:$true] %s286
          %s288 = sshll.u32 [#allocation14], 4
          %s289 = int_to_ptr.vmem [resolvable:$true] %s288
          %294 = dma.hbm_to_vmem [thread:$0]  %s287, 512, %s289, [#allocation13], 128, 128, 8
        $region28: #{tpu_custom_call.1} parent=11 // pred_fallthru
          _
        // Predicated region
        $region29: #{tpu_custom_call.1} parent=11 // pred_check
          %p295 = pneg %p156
        $region30: #{tpu_custom_call.1} parent=11 // pred_check_branch
          %297 = sbr.rel (%p295) target = $region32
        $region31: #{tpu_custom_call.1} parent=11 // pred_region
          %299 = vsyncadd [#allocation16], 0
          %s300 = sshll.u32 %s5, 4
          %s301 = int_to_ptr.hbm [resolvable:$true] %s300
          %s302 = sshll.u32 [#allocation15], 4
          %s303 = int_to_ptr.vmem [resolvable:$true] %s302
          %308 = dma.hbm_to_vmem [thread:$0]  %s301, 512, %s303, [#allocation16], 128, 128, 8
        $region32: #{tpu_custom_call.1} parent=11 // pred_fallthru
          _
      $region12: #{tpu_custom_call.1} parent=5 // pred_fallthru
        _
      %p309 = scmp.lt.s32.totalorder %s25, 3
      // Predicated region
      $region33: #{tpu_custom_call.1} parent=5 // pred_check
        %p310 = pneg %p309
      $region34: #{tpu_custom_call.1} parent=5 // pred_check_branch
        %312 = sbr.rel (%p310) target = $region36
      $region35: #{tpu_custom_call.1} parent=5 // pred_region
        // Predicated region
        $region37: #{tpu_custom_call.1} parent=35 // pred_check
          %p313 = pneg %p45
        $region38: #{tpu_custom_call.1} parent=35 // pred_check_branch
          %315 = sbr.rel (%p313) target = $region40
        $region39: #{tpu_custom_call.1} parent=35 // pred_region
          %s316 = sand.u32 %s35, 1
          %s317 = scalar_lea.sflag [#allocation7], %s316
          %s318 = sand.u32 %s35, 1
          %s319 = smul.addr %s318, 12
          %s320 = scalar_lea.vmem [#allocation6], %s319
          %s321 = smul.u32 3, %s25
          %323 = vsyncadd %s317, 0
          %s324 = smul.addr %s321, 4
          %s325 = scalar_lea.hbm %s0, %s324
          %s326 = sshll.u32 %s325, 4
          %s327 = int_to_ptr.hbm [resolvable:$true] %s326
          %s328 = sshll.u32 %s320, 4
          %s329 = int_to_ptr.vmem [resolvable:$true] %s328
          %334 = dma.hbm_to_vmem [thread:$0]  %s327, 192, %s329, %s317, 64, 64, 4
        $region40: #{tpu_custom_call.1} parent=35 // pred_fallthru
          _
      $region36: #{tpu_custom_call.1} parent=5 // pred_fallthru
        _
      %p335 = scmp.le.s32.totalorder 1, %s25
      %p336 = scmp.lt.s32.totalorder %s25, 4
      %p337 = pnand %p335, %p336
      %p338 = pneg %p337
      // Predicated region
      $region41: #{tpu_custom_call.1} parent=5 // pred_check
        _
      $region42: #{tpu_custom_call.1} parent=5 // pred_check_branch
        %340 = sbr.rel (%p337) target = $region44
      $region43: #{tpu_custom_call.1} parent=5 // pred_region
        %s341 = ssub.s32 %s25, 1
        %s342 = sand.u32 %s38, 1
        %s343 = scalar_lea.sflag [#allocation7], %s342
        %s344 = sand.u32 %s38, 1
        %s345 = smul.addr %s344, 12
        %s346 = scalar_lea.vmem [#allocation6], %s345
        // Predicated region
        $region45: #{tpu_custom_call.1} parent=43 // pred_check
          %p347 = pneg %p51
        $region46: #{tpu_custom_call.1} parent=43 // pred_check_branch
          %349 = sbr.rel (%p347) target = $region48
        $region47: #{tpu_custom_call.1} parent=43 // pred_region
          %351 = dma.done %s343, 192
        $region48: #{tpu_custom_call.1} parent=43 // pred_fallthru
          _
        // Predicated region
        $region49: #{tpu_custom_call.1} parent=43 // pred_check
          %p352 = pneg %p72
        $region50: #{tpu_custom_call.1} parent=43 // pred_check_branch
          %354 = sbr.rel (%p352) target = $region52
        $region51: #{tpu_custom_call.1} parent=43 // pred_region
          %356 = dma.done [#allocation10], 4096
        $region52: #{tpu_custom_call.1} parent=43 // pred_fallthru
          _
        // Predicated region
        $region53: #{tpu_custom_call.1} parent=43 // pred_check
          %p357 = pneg %p93
        $region54: #{tpu_custom_call.1} parent=43 // pred_check_branch
          %359 = sbr.rel (%p357) target = $region56
        $region55: #{tpu_custom_call.1} parent=43 // pred_region
          %361 = dma.done [#allocation10], 4096
        $region56: #{tpu_custom_call.1} parent=43 // pred_fallthru
          _
        // Predicated region
        $region57: #{tpu_custom_call.1} parent=43 // pred_check
          %p362 = pneg %p114
        $region58: #{tpu_custom_call.1} parent=43 // pred_check_branch
          %364 = sbr.rel (%p362) target = $region60
        $region59: #{tpu_custom_call.1} parent=43 // pred_region
          %366 = dma.done [#allocation13], 64
        $region60: #{tpu_custom_call.1} parent=43 // pred_fallthru
          _
        // Predicated region
        $region61: #{tpu_custom_call.1} parent=43 // pred_check
          %p367 = pneg %p135
        $region62: #{tpu_custom_call.1} parent=43 // pred_check_branch
          %369 = sbr.rel (%p367) target = $region64
        $region63: #{tpu_custom_call.1} parent=43 // pred_region
          %371 = dma.done [#allocation13], 512
        $region64: #{tpu_custom_call.1} parent=43 // pred_fallthru
          _
        // Predicated region
        $region65: #{tpu_custom_call.1} parent=43 // pred_check
          %p372 = pneg %p156
        $region66: #{tpu_custom_call.1} parent=43 // pred_check_branch
          %374 = sbr.rel (%p372) target = $region68
        $region67: #{tpu_custom_call.1} parent=43 // pred_region
          %376 = dma.done [#allocation16], 512
        $region68: #{tpu_custom_call.1} parent=43 // pred_fallthru
          _
        %s377 = sand.u32 %s38, 1
        %s378 = scalar_lea.sflag [#allocation7], %s377
        %s379 = sand.u32 %s38, 1
        %s380 = smul.addr %s379, 12
        %s381 = scalar_lea.vmem [#allocation6], %s380
        %p382 = pneg %p51
        %p383 = pneg %p48
        %p384 = pneg %p72
        %p385 = pneg %p69
        %p386 = pneg %p93
        %p387 = pneg %p90
        %p388 = pneg %p114
        %p389 = pneg %p111
        %p390 = pneg %p135
        %p391 = pneg %p132
        %p392 = pneg %p156
        %p393 = pneg %p153
        %p394 = pneg %p182
        %p395 = pneg %p179
        %s396 = sand.u32 %s169, 1
        %s397 = scalar_lea.sflag [#allocation8], %s396
        %s398 = sand.u32 %s169, 1
        %s399 = smul.addr %s398, 12
        %s400 = scalar_lea.vmem [#allocation17], %s399
        %p401 = pneg %p203
        %p402 = pneg %p200
        %p403 = pneg %p224
        %p404 = pneg %p221
        %s405 = smul.u32 3, %s30
        %s406 = smul.u32 3, %s30
        %p407 = scmp.eq.s32.totalorder %s30, 0
        // Predicated region
        $region69: #{tpu_custom_call.1} parent=43 // pred_check
          %p408 = pneg %p407
        $region70: #{tpu_custom_call.1} parent=43 // pred_check_branch
          %410 = sbr.rel (%p408) target = $region72
        $region71: #{tpu_custom_call.1} parent=43 // pred_region
          %v411 = vld [vmem:[#allocation14] sm:$0xff]
          %v412 = vld [vmem:[#allocation14 + $0x8] sm:$0xff]
          %v413 = vld [vmem:[#allocation14 + $0x10] sm:$0xff]
          %v414 = vld [vmem:[#allocation14 + $0x18] sm:$0xff]
          %415 = vst [vmem:[#allocation2] sm:$0xff] %v411
          %416 = vst [vmem:[#allocation2 + $0x8] sm:$0xff] %v412
          %417 = vst [vmem:[#allocation2 + $0x10] sm:$0xff] %v413
          %418 = vst [vmem:[#allocation2 + $0x18] sm:$0xff] %v414
          %v419 = vld [vmem:[#allocation15] sm:$0xff]
          %v420 = vld [vmem:[#allocation15 + $0x8] sm:$0xff]
          %v421 = vld [vmem:[#allocation15 + $0x10] sm:$0xff]
          %v422 = vld [vmem:[#allocation15 + $0x18] sm:$0xff]
          %423 = vst [vmem:[#allocation3] sm:$0xff] %v419
          %424 = vst [vmem:[#allocation3 + $0x8] sm:$0xff] %v420
          %425 = vst [vmem:[#allocation3 + $0x10] sm:$0xff] %v421
          %426 = vst [vmem:[#allocation3 + $0x18] sm:$0xff] %v422
        $region72: #{tpu_custom_call.1} parent=43 // pred_fallthru
          _
        %v427 = vlaneseq
        %v428 = vand.u32 %v427, 127
        %vm429 = vcmp.ge.s32.totalorder %v428, 64
        %vm430 = vcmp.lt.s32.totalorder %v428, 96
        %vm431 = vmand %vm429, %vm430
        %v432 = vld [vmem:[%s346] sm:$0xf]
        %v433 = vld [vmem:[%s346 + $0x4] sm:$0xf]
        %v434 = vld [vmem:[%s346 + $0x8] sm:$0xf]
        %v435 = vld [vmem:[#allocation9] sm:$0xf]
        %v436 = vld [vmem:[#allocation9 + $0x4] sm:$0xf]
        %v437 = vld [vmem:[#allocation9 + $0x8] sm:$0xf]
        %v438 = vld [vmem:[#allocation9 + $0xc] sm:$0xf]
        %v439 = vld [vmem:[#allocation9 + $0x10] sm:$0xf]
        %v440 = vld [vmem:[#allocation9 + $0x14] sm:$0xf]
        %v441 = vld [vmem:[#allocation9 + $0x18] sm:$0xf]
        %v442 = vld [vmem:[#allocation9 + $0x1c] sm:$0xf]
        %v443 = vld [vmem:[#allocation9 + $0x20] sm:$0xf]
        %v444 = vld [vmem:[#allocation9 + $0x24] sm:$0xf]
        %v445 = vld [vmem:[#allocation9 + $0x28] sm:$0xf]
        %v446 = vld [vmem:[#allocation9 + $0x2c] sm:$0xf]
        %v447 = vld [vmem:[#allocation9 + $0x30] sm:$0xf]
        %v448 = vld [vmem:[#allocation9 + $0x34] sm:$0xf]
        %v449 = vld [vmem:[#allocation9 + $0x38] sm:$0xf]
        %v450 = vld [vmem:[#allocation9 + $0x3c] sm:$0xf]
        %v451 = vld [vmem:[#allocation12] sm:$0x1]
        %v453 = vperm.slane %v451, 0
        %v458 = vunpack.c.l.b16 %v432
        %v459 = vunpack.c.l.b16 %v433
        %v460 = vunpack.c.l.b16 %v434
        %v461 = vpack.c.b16 %v459, %v458
        %v462 = vpack.c.b16 %v460, %v460
        %v481 = vunpack.c.l.b16 %v435
        %v482 = vunpack.c.l.b16 %v436
        %v483 = vunpack.c.l.b16 %v437
        %v484 = vunpack.c.l.b16 %v438
        %v485 = vunpack.c.l.b16 %v439
        %v486 = vunpack.c.l.b16 %v440
        %v487 = vunpack.c.l.b16 %v441
        %v488 = vunpack.c.l.b16 %v442
        %v489 = vunpack.c.l.b16 %v443
        %v490 = vunpack.c.l.b16 %v444
        %v491 = vunpack.c.l.b16 %v445
        %v492 = vunpack.c.l.b16 %v446
        %v493 = vunpack.c.l.b16 %v447
        %v494 = vunpack.c.l.b16 %v448
        %v495 = vunpack.c.l.b16 %v449
        %v496 = vunpack.c.l.b16 %v450
        %v497 = vpack.c.b16 %v482, %v481
        %v498 = vpack.c.b16 %v484, %v483
        %v499 = vpack.c.b16 %v486, %v485
        %v500 = vpack.c.b16 %v488, %v487
        %v501 = vpack.c.b16 %v490, %v489
        %v502 = vpack.c.b16 %v492, %v491
        %v503 = vpack.c.b16 %v494, %v493
        %v504 = vpack.c.b16 %v496, %v495
        %513 = vmatpush.bf16.msra.mxu0 %v504
        %514 = vmatpush.bf16.msra.mxu0 %v503
        %515 = vmatpush.bf16.msra.mxu0 %v502
        %516 = vmatpush.bf16.msra.mxu0 %v501
        %517 = vmatpush.bf16.msra.mxu0 %v500
        %518 = vmatpush.bf16.msra.mxu0 %v499
        %519 = vmatpush.bf16.msra.mxu0 %v498
        %520 = vmatpush.bf16.msra.mxu0 %v497
        %521 = vmatmul.bf16.gmra.mxu0 %v461
        %v522 = vpop.f32.mrf.mxu0
        %v523 = vadd.f32 %v453, %v522
        %v524 = vpop.f32.mrf.mxu0
        %v525 = vadd.f32 %v453, %v524
        %526 = vmatmul.bf16.gmra.mxu0 %v462
        %v527 = vpop.f32.mrf.mxu0
        %v528 = vadd.f32 %v453, %v527
        %v529 = vpop.f32.mrf.mxu0
        %530 = vdwg.mxu0
        %531 = vst [vmem:[#allocation5] sm:$0xff] %v523
        %532 = vst [vmem:[#allocation5 + $0x8] sm:$0xff] %v525
        %533 = vst [vmem:[#allocation5 + $0x10] sm:$0xff] %v528
        %v534 = vld [vmem:[#allocation11] sm:$0xf]
        %v535 = vld [vmem:[#allocation11 + $0x4] sm:$0xf]
        %v536 = vld [vmem:[#allocation11 + $0x8] sm:$0xf]
        %v537 = vld [vmem:[#allocation11 + $0xc] sm:$0xf]
        %v538 = vld [vmem:[#allocation11 + $0x10] sm:$0xf]
        %v539 = vld [vmem:[#allocation11 + $0x14] sm:$0xf]
        %v540 = vld [vmem:[#allocation11 + $0x18] sm:$0xf]
        %v541 = vld [vmem:[#allocation11 + $0x1c] sm:$0xf]
        %v542 = vld [vmem:[#allocation11 + $0x20] sm:$0xf]
        %v543 = vld [vmem:[#allocation11 + $0x24] sm:$0xf]
        %v544 = vld [vmem:[#allocation11 + $0x28] sm:$0xf]
        %v545 = vld [vmem:[#allocation11 + $0x2c] sm:$0xf]
        %v546 = vld [vmem:[#allocation11 + $0x30] sm:$0xf]
        %v547 = vld [vmem:[#allocation11 + $0x34] sm:$0xf]
        %v548 = vld [vmem:[#allocation11 + $0x38] sm:$0xf]
        %v549 = vld [vmem:[#allocation11 + $0x3c] sm:$0xf]
        %v550 = vld [vmem:[#allocation2] sm:$0xff]
        %v551 = vld [vmem:[#allocation3] sm:$0xff]
        %v552 = vld [vmem:[#allocation5] sm:$0xff]
        %v553 = vpack.c.bf16 %v550, %v550
        %v570 = vunpack.c.l.b16 %v534
        %v571 = vunpack.c.l.b16 %v535
        %v572 = vunpack.c.l.b16 %v536
        %v573 = vunpack.c.l.b16 %v537
        %v574 = vunpack.c.l.b16 %v538
        %v575 = vunpack.c.l.b16 %v539
        %v576 = vunpack.c.l.b16 %v540
        %v577 = vunpack.c.l.b16 %v541
        %v578 = vunpack.c.l.b16 %v542
        %v579 = vunpack.c.l.b16 %v543
        %v580 = vunpack.c.l.b16 %v544
        %v581 = vunpack.c.l.b16 %v545
        %v582 = vunpack.c.l.b16 %v546
        %v583 = vunpack.c.l.b16 %v547
        %v584 = vunpack.c.l.b16 %v548
        %v585 = vunpack.c.l.b16 %v549
        %v586 = vpack.c.b16 %v571, %v570
        %v587 = vpack.c.b16 %v573, %v572
        %v588 = vpack.c.b16 %v575, %v574
        %v589 = vpack.c.b16 %v577, %v576
        %v590 = vpack.c.b16 %v579, %v578
        %v591 = vpack.c.b16 %v581, %v580
        %v592 = vpack.c.b16 %v583, %v582
        %v593 = vpack.c.b16 %v585, %v584
        %602 = vmatpush.bf16.msra.mxu0 %v593
        %603 = vmatpush.bf16.msra.mxu0 %v592
        %604 = vmatpush.bf16.msra.mxu0 %v591
        %605 = vmatpush.bf16.msra.mxu0 %v590
        %606 = vmatpush.bf16.msra.mxu0 %v589
        %607 = vmatpush.bf16.msra.mxu0 %v588
        %608 = vmatpush.bf16.msra.mxu0 %v587
        %609 = vmatpush.bf16.msra.mxu0 %v586
        %610 = vmatmul.bf16.gmra.mxu0 %v553
        %v611 = vpop.f32.mrf.mxu0
        %v612 = vadd.f32 0.0, %v611
        %v613 = vpop.f32.mrf.mxu0
        %614 = vdwg.mxu0
        %v615 = vadd.f32 %v552, %v612
        %v616 = vtanh.pop %v615
        %v617 = vxor.u32 %v615, 2147483648
        %v618 = vmul.f32 %v617, 1.442695
        %v619 = vpow.pop %v618
        %v620 = vadd.f32 %v619, 1.0
        %v621 = vrcp.pop %v620
        %v622 = vmul.f32 %v620, %v621
        %v623 = vsub.f32 1.0, %v622
        %v624 = vmul.f32 %v621, %v623
        %v625 = vadd.f32 %v621, %v624
        %vm626 = vweird.f32 %v620
        %vm627 = vweird.f32 %v621
        %vm628 = vmor %vm626, %vm627
        %v629 = vsel %vm628, %v621, %v625
        %v630 = vand.u32 2147483647, %v620
        %vm631 = vcmp.eq.f32.partialorder %v630, 8.507059e+37
        %v632 = vand.u32 %v620, 2147483648
        %v633 = vor.u32 1.1754944e-38, %v632
        %v634 = vsel %vm631, %v633, %v629
        %v635 = vmul.f32 1.0, %v634
        %v636 = vsel %vm431, %v616, %v635
        %637 = vrot.lane.b32.xlu0 %v636, 96
        %v638 = vpop.permute.xlu0 %637
        %639 = vrot.lane.b32.xlu0 %v636, 64
        %v640 = vpop.permute.xlu0 %639
        %641 = vrot.lane.b32.xlu0 %v636, 32
        %v642 = vpop.permute.xlu0 %641
        %v643 = vmul.f32 %v638, %v551
        %v644 = vmul.f32 %v636, %v640
        %v645 = vadd.f32 %v643, %v644
        %v646 = vtanh.pop %v645
        %v647 = vmul.f32 %v642, %v646
        %s648 = smul.u32 %s30, 3
        %p649 = scmp.lt.s32.totalorder %s648, 8
        %s650 = scalar_select %p649, 1, 0
        %v651 = vstv %s650
        %vm652 = vcmp.eq.s32.totalorder %v651, 1
        %v653 = vsel %vm652, %v647, %v550
        %v654 = vsel %vm652, %v645, %v551
        %v655 = vpack.c.bf16 %v653, %v653
        %656 = vst [vmem:[#allocation4] sm:$0xf] %v655
        %s657 = scalar_lea.vmem [#allocation5], 8
        %v658 = vld [vmem:[%s657] sm:$0xff]
        %659 = vmatpush.bf16.msra.mxu0 %v593
        %660 = vmatpush.bf16.msra.mxu0 %v592
        %661 = vmatpush.bf16.msra.mxu0 %v591
        %662 = vmatpush.bf16.msra.mxu0 %v590
        %663 = vmatpush.bf16.msra.mxu0 %v589
        %664 = vmatpush.bf16.msra.mxu0 %v588
        %665 = vmatpush.bf16.msra.mxu0 %v587
        %666 = vmatpush.bf16.msra.mxu0 %v586
        %667 = vmatmul.bf16.gmra.mxu0 %v655
        %v668 = vpop.f32.mrf.mxu0
        %v669 = vadd.f32 0.0, %v668
        %v670 = vpop.f32.mrf.mxu0
        %671 = vdwg.mxu0
        %v672 = vadd.f32 %v658, %v669
        %v673 = vtanh.pop %v672
        %v674 = vxor.u32 %v672, 2147483648
        %v675 = vmul.f32 %v674, 1.442695
        %v676 = vpow.pop %v675
        %v677 = vadd.f32 %v676, 1.0
        %v678 = vrcp.pop %v677
        %v679 = vmul.f32 %v677, %v678
        %v680 = vsub.f32 1.0, %v679
        %v681 = vmul.f32 %v678, %v680
        %v682 = vadd.f32 %v678, %v681
        %vm683 = vweird.f32 %v677
        %vm684 = vweird.f32 %v678
        %vm685 = vmor %vm683, %vm684
        %v686 = vsel %vm685, %v678, %v682
        %v687 = vand.u32 2147483647, %v677
        %vm688 = vcmp.eq.f32.partialorder %v687, 8.507059e+37
        %v689 = vand.u32 %v677, 2147483648
        %v690 = vor.u32 1.1754944e-38, %v689
        %v691 = vsel %vm688, %v690, %v686
        %v692 = vmul.f32 1.0, %v691
        %v693 = vsel %vm431, %v673, %v692
        %694 = vrot.lane.b32.xlu0 %v693, 96
        %v695 = vpop.permute.xlu0 %694
        %696 = vrot.lane.b32.xlu0 %v693, 64
        %v697 = vpop.permute.xlu0 %696
        %698 = vrot.lane.b32.xlu0 %v693, 32
        %v699 = vpop.permute.xlu0 %698
        %v700 = vmul.f32 %v695, %v654
        %v701 = vmul.f32 %v693, %v697
        %v702 = vadd.f32 %v700, %v701
        %v703 = vtanh.pop %v702
        %v704 = vmul.f32 %v699, %v703
        %s705 = sadd.s32 %s648, 1
        %p706 = scmp.lt.s32.totalorder %s705, 8
        %s707 = scalar_select %p706, 1, 0
        %v708 = vstv %s707
        %vm709 = vcmp.eq.s32.totalorder %v708, 1
        %v710 = vsel %vm709, %v704, %v653
        %v711 = vsel %vm709, %v702, %v654
        %v712 = vpack.c.bf16 %v710, %v710
        %s713 = scalar_lea.vmem [#allocation4], 4
        %714 = vst [vmem:[%s713] sm:$0xf] %v712
        %s715 = scalar_lea.vmem [#allocation5], 16
        %v716 = vld [vmem:[%s715] sm:$0xff]
        %717 = vmatpush.bf16.msra.mxu0 %v593
        %718 = vmatpush.bf16.msra.mxu0 %v592
        %719 = vmatpush.bf16.msra.mxu0 %v591
        %720 = vmatpush.bf16.msra.mxu0 %v590
        %721 = vmatpush.bf16.msra.mxu0 %v589
        %722 = vmatpush.bf16.msra.mxu0 %v588
        %723 = vmatpush.bf16.msra.mxu0 %v587
        %724 = vmatpush.bf16.msra.mxu0 %v586
        %725 = vmatmul.bf16.gmra.mxu0 %v712
        %v726 = vpop.f32.mrf.mxu0
        %v727 = vadd.f32 0.0, %v726
        %v728 = vpop.f32.mrf.mxu0
        %729 = vdwg.mxu0
        %v730 = vadd.f32 %v716, %v727
        %v731 = vtanh.pop %v730
        %v732 = vxor.u32 %v730, 2147483648
        %v733 = vmul.f32 %v732, 1.442695
        %v734 = vpow.pop %v733
        %v735 = vadd.f32 %v734, 1.0
        %v736 = vrcp.pop %v735
        %v737 = vmul.f32 %v735, %v736
        %v738 = vsub.f32 1.0, %v737
        %v739 = vmul.f32 %v736, %v738
        %v740 = vadd.f32 %v736, %v739
        %vm741 = vweird.f32 %v735
        %vm742 = vweird.f32 %v736
        %vm743 = vmor %vm741, %vm742
        %v744 = vsel %vm743, %v736, %v740
        %v745 = vand.u32 2147483647, %v735
        %vm746 = vcmp.eq.f32.partialorder %v745, 8.507059e+37
        %v747 = vand.u32 %v735, 2147483648
        %v748 = vor.u32 1.1754944e-38, %v747
        %v749 = vsel %vm746, %v748, %v744
        %v750 = vmul.f32 1.0, %v749
        %v751 = vsel %vm431, %v731, %v750
        %752 = vrot.lane.b32.xlu0 %v751, 96
        %v753 = vpop.permute.xlu0 %752
        %754 = vrot.lane.b32.xlu0 %v751, 64
        %v755 = vpop.permute.xlu0 %754
        %756 = vrot.lane.b32.xlu0 %v751, 32
        %v757 = vpop.permute.xlu0 %756
        %v758 = vmul.f32 %v753, %v711
        %v759 = vmul.f32 %v751, %v755
        %v760 = vadd.f32 %v758, %v759
        %v761 = vtanh.pop %v760
        %v762 = vmul.f32 %v757, %v761
        %s763 = sadd.s32 %s648, 2
        %p764 = scmp.lt.s32.totalorder %s763, 8
        %s765 = scalar_select %p764, 1, 0
        %v766 = vstv %s765
        %vm767 = vcmp.eq.s32.totalorder %v766, 1
        %v768 = vsel %vm767, %v762, %v710
        %v769 = vsel %vm767, %v760, %v711
        %v770 = vpack.c.bf16 %v768, %v768
        %s771 = scalar_lea.vmem [#allocation4], 8
        %772 = vst [vmem:[%s771] sm:$0xf] %v770
        %773 = vst [vmem:[#allocation2] sm:$0xff] %v768
        %774 = vst [vmem:[#allocation3] sm:$0xff] %v769
        %v775 = vld [vmem:[#allocation4] sm:$0xf]
        %v776 = vld [vmem:[#allocation4 + $0x4] sm:$0xf]
        %v777 = vld [vmem:[#allocation4 + $0x8] sm:$0xf]
        %s778 = scalar_lea.vmem [#allocation9], 64
        %v779 = vld [vmem:[%s778] sm:$0xf]
        %v780 = vld [vmem:[%s778 + $0x4] sm:$0xf]
        %v781 = vld [vmem:[%s778 + $0x8] sm:$0xf]
        %v782 = vld [vmem:[%s778 + $0xc] sm:$0xf]
        %v783 = vld [vmem:[%s778 + $0x10] sm:$0xf]
        %v784 = vld [vmem:[%s778 + $0x14] sm:$0xf]
        %v785 = vld [vmem:[%s778 + $0x18] sm:$0xf]
        %v786 = vld [vmem:[%s778 + $0x1c] sm:$0xf]
        %v787 = vld [vmem:[%s778 + $0x20] sm:$0xf]
        %v788 = vld [vmem:[%s778 + $0x24] sm:$0xf]
        %v789 = vld [vmem:[%s778 + $0x28] sm:$0xf]
        %v790 = vld [vmem:[%s778 + $0x2c] sm:$0xf]
        %v791 = vld [vmem:[%s778 + $0x30] sm:$0xf]
        %v792 = vld [vmem:[%s778 + $0x34] sm:$0xf]
        %v793 = vld [vmem:[%s778 + $0x38] sm:$0xf]
        %v794 = vld [vmem:[%s778 + $0x3c] sm:$0xf]
        %s795 = scalar_lea.vmem [#allocation12], 1
        %v796 = vld [vmem:[%s795] sm:$0x1]
        %v798 = vperm.slane %v796, 0
        %v803 = vunpack.c.l.b16 %v775
        %v804 = vunpack.c.l.b16 %v776
        %v805 = vunpack.c.l.b16 %v777
        %v806 = vpack.c.b16 %v804, %v803
        %v807 = vpack.c.b16 %v805, %v805
        %v826 = vunpack.c.l.b16 %v779
        %v827 = vunpack.c.l.b16 %v780
        %v828 = vunpack.c.l.b16 %v781
        %v829 = vunpack.c.l.b16 %v782
        %v830 = vunpack.c.l.b16 %v783
        %v831 = vunpack.c.l.b16 %v784
        %v832 = vunpack.c.l.b16 %v785
        %v833 = vunpack.c.l.b16 %v786
        %v834 = vunpack.c.l.b16 %v787
        %v835 = vunpack.c.l.b16 %v788
        %v836 = vunpack.c.l.b16 %v789
        %v837 = vunpack.c.l.b16 %v790
        %v838 = vunpack.c.l.b16 %v791
        %v839 = vunpack.c.l.b16 %v792
        %v840 = vunpack.c.l.b16 %v793
        %v841 = vunpack.c.l.b16 %v794
        %v842 = vpack.c.b16 %v827, %v826
        %v843 = vpack.c.b16 %v829, %v828
        %v844 = vpack.c.b16 %v831, %v830
        %v845 = vpack.c.b16 %v833, %v832
        %v846 = vpack.c.b16 %v835, %v834
        %v847 = vpack.c.b16 %v837, %v836
        %v848 = vpack.c.b16 %v839, %v838
        %v849 = vpack.c.b16 %v841, %v840
        %858 = vmatpush.bf16.msra.mxu0 %v849
        %859 = vmatpush.bf16.msra.mxu0 %v848
        %860 = vmatpush.bf16.msra.mxu0 %v847
        %861 = vmatpush.bf16.msra.mxu0 %v846
        %862 = vmatpush.bf16.msra.mxu0 %v845
        %863 = vmatpush.bf16.msra.mxu0 %v844
        %864 = vmatpush.bf16.msra.mxu0 %v843
        %865 = vmatpush.bf16.msra.mxu0 %v842
        %866 = vmatmul.bf16.gmra.mxu0 %v806
        %v867 = vpop.f32.mrf.mxu0
        %v868 = vadd.f32 %v798, %v867
        %v869 = vpop.f32.mrf.mxu0
        %v870 = vadd.f32 %v798, %v869
        %871 = vmatmul.bf16.gmra.mxu0 %v807
        %v872 = vpop.f32.mrf.mxu0
        %v873 = vadd.f32 %v798, %v872
        %v874 = vpop.f32.mrf.mxu0
        %875 = vdwg.mxu0
        %876 = vst [vmem:[#allocation5] sm:$0xff] %v868
        %877 = vst [vmem:[#allocation5 + $0x8] sm:$0xff] %v870
        %878 = vst [vmem:[#allocation5 + $0x10] sm:$0xff] %v873
        %s879 = scalar_lea.vmem [#allocation11], 64
        %v880 = vld [vmem:[%s879] sm:$0xf]
        %v881 = vld [vmem:[%s879 + $0x4] sm:$0xf]
        %v882 = vld [vmem:[%s879 + $0x8] sm:$0xf]
        %v883 = vld [vmem:[%s879 + $0xc] sm:$0xf]
        %v884 = vld [vmem:[%s879 + $0x10] sm:$0xf]
        %v885 = vld [vmem:[%s879 + $0x14] sm:$0xf]
        %v886 = vld [vmem:[%s879 + $0x18] sm:$0xf]
        %v887 = vld [vmem:[%s879 + $0x1c] sm:$0xf]
        %v888 = vld [vmem:[%s879 + $0x20] sm:$0xf]
        %v889 = vld [vmem:[%s879 + $0x24] sm:$0xf]
        %v890 = vld [vmem:[%s879 + $0x28] sm:$0xf]
        %v891 = vld [vmem:[%s879 + $0x2c] sm:$0xf]
        %v892 = vld [vmem:[%s879 + $0x30] sm:$0xf]
        %v893 = vld [vmem:[%s879 + $0x34] sm:$0xf]
        %v894 = vld [vmem:[%s879 + $0x38] sm:$0xf]
        %v895 = vld [vmem:[%s879 + $0x3c] sm:$0xf]
        %s896 = scalar_lea.vmem [#allocation2], 8
        %v897 = vld [vmem:[%s896] sm:$0xff]
        %s898 = scalar_lea.vmem [#allocation3], 8
        %v899 = vld [vmem:[%s898] sm:$0xff]
        %v900 = vld [vmem:[#allocation5] sm:$0xff]
        %v901 = vpack.c.bf16 %v897, %v897
        %v918 = vunpack.c.l.b16 %v880
        %v919 = vunpack.c.l.b16 %v881
        %v920 = vunpack.c.l.b16 %v882
        %v921 = vunpack.c.l.b16 %v883
        %v922 = vunpack.c.l.b16 %v884
        %v923 = vunpack.c.l.b16 %v885
        %v924 = vunpack.c.l.b16 %v886
        %v925 = vunpack.c.l.b16 %v887
        %v926 = vunpack.c.l.b16 %v888
        %v927 = vunpack.c.l.b16 %v889
        %v928 = vunpack.c.l.b16 %v890
        %v929 = vunpack.c.l.b16 %v891
        %v930 = vunpack.c.l.b16 %v892
        %v931 = vunpack.c.l.b16 %v893
        %v932 = vunpack.c.l.b16 %v894
        %v933 = vunpack.c.l.b16 %v895
        %v934 = vpack.c.b16 %v919, %v918
        %v935 = vpack.c.b16 %v921, %v920
        %v936 = vpack.c.b16 %v923, %v922
        %v937 = vpack.c.b16 %v925, %v924
        %v938 = vpack.c.b16 %v927, %v926
        %v939 = vpack.c.b16 %v929, %v928
        %v940 = vpack.c.b16 %v931, %v930
        %v941 = vpack.c.b16 %v933, %v932
        %950 = vmatpush.bf16.msra.mxu0 %v941
        %951 = vmatpush.bf16.msra.mxu0 %v940
        %952 = vmatpush.bf16.msra.mxu0 %v939
        %953 = vmatpush.bf16.msra.mxu0 %v938
        %954 = vmatpush.bf16.msra.mxu0 %v937
        %955 = vmatpush.bf16.msra.mxu0 %v936
        %956 = vmatpush.bf16.msra.mxu0 %v935
        %957 = vmatpush.bf16.msra.mxu0 %v934
        %958 = vmatmul.bf16.gmra.mxu0 %v901
        %v959 = vpop.f32.mrf.mxu0
        %v960 = vadd.f32 0.0, %v959
        %v961 = vpop.f32.mrf.mxu0
        %962 = vdwg.mxu0
        %v963 = vadd.f32 %v900, %v960
        %v964 = vtanh.pop %v963
        %v965 = vxor.u32 %v963, 2147483648
        %v966 = vmul.f32 %v965, 1.442695
        %v967 = vpow.pop %v966
        %v968 = vadd.f32 %v967, 1.0
        %v969 = vrcp.pop %v968
        %v970 = vmul.f32 %v968, %v969
        %v971 = vsub.f32 1.0, %v970
        %v972 = vmul.f32 %v969, %v971
        %v973 = vadd.f32 %v969, %v972
        %vm974 = vweird.f32 %v968
        %vm975 = vweird.f32 %v969
        %vm976 = vmor %vm974, %vm975
        %v977 = vsel %vm976, %v969, %v973
        %v978 = vand.u32 2147483647, %v968
        %vm979 = vcmp.eq.f32.partialorder %v978, 8.507059e+37
        %v980 = vand.u32 %v968, 2147483648
        %v981 = vor.u32 1.1754944e-38, %v980
        %v982 = vsel %vm979, %v981, %v977
        %v983 = vmul.f32 1.0, %v982
        %v984 = vsel %vm431, %v964, %v983
        %985 = vrot.lane.b32.xlu0 %v984, 96
        %v986 = vpop.permute.xlu0 %985
        %987 = vrot.lane.b32.xlu0 %v984, 64
        %v988 = vpop.permute.xlu0 %987
        %989 = vrot.lane.b32.xlu0 %v984, 32
        %v990 = vpop.permute.xlu0 %989
        %v991 = vmul.f32 %v986, %v899
        %v992 = vmul.f32 %v984, %v988
        %v993 = vadd.f32 %v991, %v992
        %v994 = vtanh.pop %v993
        %v995 = vmul.f32 %v990, %v994
        %v996 = vsel %vm652, %v995, %v897
        %v997 = vsel %vm652, %v993, %v899
        %v998 = vpack.c.bf16 %v996, %v996
        %999 = vst [vmem:[#allocation4] sm:$0xf] %v998
        %v1000 = vld [vmem:[%s657] sm:$0xff]
        %1001 = vmatpush.bf16.msra.mxu0 %v941
        %1002 = vmatpush.bf16.msra.mxu0 %v940
        %1003 = vmatpush.bf16.msra.mxu0 %v939
        %1004 = vmatpush.bf16.msra.mxu0 %v938
        %1005 = vmatpush.bf16.msra.mxu0 %v937
        %1006 = vmatpush.bf16.msra.mxu0 %v936
        %1007 = vmatpush.bf16.msra.mxu0 %v935
        %1008 = vmatpush.bf16.msra.mxu0 %v934
        %1009 = vmatmul.bf16.gmra.mxu0 %v998
        %v1010 = vpop.f32.mrf.mxu0
        %v1011 = vadd.f32 0.0, %v1010
        %v1012 = vpop.f32.mrf.mxu0
        %1013 = vdwg.mxu0
        %v1014 = vadd.f32 %v1000, %v1011
        %v1015 = vtanh.pop %v1014
        %v1016 = vxor.u32 %v1014, 2147483648
        %v1017 = vmul.f32 %v1016, 1.442695
        %v1018 = vpow.pop %v1017
        %v1019 = vadd.f32 %v1018, 1.0
        %v1020 = vrcp.pop %v1019
        %v1021 = vmul.f32 %v1019, %v1020
        %v1022 = vsub.f32 1.0, %v1021
        %v1023 = vmul.f32 %v1020, %v1022
        %v1024 = vadd.f32 %v1020, %v1023
        %vm1025 = vweird.f32 %v1019
        %vm1026 = vweird.f32 %v1020
        %vm1027 = vmor %vm1025, %vm1026
        %v1028 = vsel %vm1027, %v1020, %v1024
        %v1029 = vand.u32 2147483647, %v1019
        %vm1030 = vcmp.eq.f32.partialorder %v1029, 8.507059e+37
        %v1031 = vand.u32 %v1019, 2147483648
        %v1032 = vor.u32 1.1754944e-38, %v1031
        %v1033 = vsel %vm1030, %v1032, %v1028
        %v1034 = vmul.f32 1.0, %v1033
        %v1035 = vsel %vm431, %v1015, %v1034
        %1036 = vrot.lane.b32.xlu0 %v1035, 96
        %v1037 = vpop.permute.xlu0 %1036
        %1038 = vrot.lane.b32.xlu0 %v1035, 64
        %v1039 = vpop.permute.xlu0 %1038
        %1040 = vrot.lane.b32.xlu0 %v1035, 32
        %v1041 = vpop.permute.xlu0 %1040
        %v1042 = vmul.f32 %v1037, %v997
        %v1043 = vmul.f32 %v1035, %v1039
        %v1044 = vadd.f32 %v1042, %v1043
        %v1045 = vtanh.pop %v1044
        %v1046 = vmul.f32 %v1041, %v1045
        %v1047 = vsel %vm709, %v1046, %v996
        %v1048 = vsel %vm709, %v1044, %v997
        %v1049 = vpack.c.bf16 %v1047, %v1047
        %1050 = vst [vmem:[%s713] sm:$0xf] %v1049
        %v1051 = vld [vmem:[%s715] sm:$0xff]
        %1052 = vmatpush.bf16.msra.mxu0 %v941
        %1053 = vmatpush.bf16.msra.mxu0 %v940
        %1054 = vmatpush.bf16.msra.mxu0 %v939
        %1055 = vmatpush.bf16.msra.mxu0 %v938
        %1056 = vmatpush.bf16.msra.mxu0 %v937
        %1057 = vmatpush.bf16.msra.mxu0 %v936
        %1058 = vmatpush.bf16.msra.mxu0 %v935
        %1059 = vmatpush.bf16.msra.mxu0 %v934
        %1060 = vmatmul.bf16.gmra.mxu0 %v1049
        %v1061 = vpop.f32.mrf.mxu0
        %v1062 = vadd.f32 0.0, %v1061
        %v1063 = vpop.f32.mrf.mxu0
        %1064 = vdwg.mxu0
        %v1065 = vadd.f32 %v1051, %v1062
        %v1066 = vtanh.pop %v1065
        %v1067 = vxor.u32 %v1065, 2147483648
        %v1068 = vmul.f32 %v1067, 1.442695
        %v1069 = vpow.pop %v1068
        %v1070 = vadd.f32 %v1069, 1.0
        %v1071 = vrcp.pop %v1070
        %v1072 = vmul.f32 %v1070, %v1071
        %v1073 = vsub.f32 1.0, %v1072
        %v1074 = vmul.f32 %v1071, %v1073
        %v1075 = vadd.f32 %v1071, %v1074
        %vm1076 = vweird.f32 %v1070
        %vm1077 = vweird.f32 %v1071
        %vm1078 = vmor %vm1076, %vm1077
        %v1079 = vsel %vm1078, %v1071, %v1075
        %v1080 = vand.u32 2147483647, %v1070
        %vm1081 = vcmp.eq.f32.partialorder %v1080, 8.507059e+37
        %v1082 = vand.u32 %v1070, 2147483648
        %v1083 = vor.u32 1.1754944e-38, %v1082
        %v1084 = vsel %vm1081, %v1083, %v1079
        %v1085 = vmul.f32 1.0, %v1084
        %v1086 = vsel %vm431, %v1066, %v1085
        %1087 = vrot.lane.b32.xlu0 %v1086, 96
        %v1088 = vpop.permute.xlu0 %1087
        %1089 = vrot.lane.b32.xlu0 %v1086, 64
        %v1090 = vpop.permute.xlu0 %1089
        %1091 = vrot.lane.b32.xlu0 %v1086, 32
        %v1092 = vpop.permute.xlu0 %1091
        %v1093 = vmul.f32 %v1088, %v1048
        %v1094 = vmul.f32 %v1086, %v1090
        %v1095 = vadd.f32 %v1093, %v1094
        %v1096 = vtanh.pop %v1095
        %v1097 = vmul.f32 %v1092, %v1096
        %v1098 = vsel %vm767, %v1097, %v1047
        %v1099 = vsel %vm767, %v1095, %v1048
        %v1100 = vpack.c.bf16 %v1098, %v1098
        %1101 = vst [vmem:[%s771] sm:$0xf] %v1100
        %1102 = vst [vmem:[%s896] sm:$0xff] %v1098
        %1103 = vst [vmem:[%s898] sm:$0xff] %v1099
        %v1104 = vld [vmem:[#allocation4] sm:$0xf]
        %v1105 = vld [vmem:[#allocation4 + $0x4] sm:$0xf]
        %v1106 = vld [vmem:[#allocation4 + $0x8] sm:$0xf]
        %s1107 = scalar_lea.vmem [#allocation9], 128
        %v1108 = vld [vmem:[%s1107] sm:$0xf]
        %v1109 = vld [vmem:[%s1107 + $0x4] sm:$0xf]
        %v1110 = vld [vmem:[%s1107 + $0x8] sm:$0xf]
        %v1111 = vld [vmem:[%s1107 + $0xc] sm:$0xf]
        %v1112 = vld [vmem:[%s1107 + $0x10] sm:$0xf]
        %v1113 = vld [vmem:[%s1107 + $0x14] sm:$0xf]
        %v1114 = vld [vmem:[%s1107 + $0x18] sm:$0xf]
        %v1115 = vld [vmem:[%s1107 + $0x1c] sm:$0xf]
        %v1116 = vld [vmem:[%s1107 + $0x20] sm:$0xf]
        %v1117 = vld [vmem:[%s1107 + $0x24] sm:$0xf]
        %v1118 = vld [vmem:[%s1107 + $0x28] sm:$0xf]
        %v1119 = vld [vmem:[%s1107 + $0x2c] sm:$0xf]
        %v1120 = vld [vmem:[%s1107 + $0x30] sm:$0xf]
        %v1121 = vld [vmem:[%s1107 + $0x34] sm:$0xf]
        %v1122 = vld [vmem:[%s1107 + $0x38] sm:$0xf]
        %v1123 = vld [vmem:[%s1107 + $0x3c] sm:$0xf]
        %s1124 = scalar_lea.vmem [#allocation12], 2
        %v1125 = vld [vmem:[%s1124] sm:$0x1]
        %v1127 = vperm.slane %v1125, 0
        %v1132 = vunpack.c.l.b16 %v1104
        %v1133 = vunpack.c.l.b16 %v1105
        %v1134 = vunpack.c.l.b16 %v1106
        %v1135 = vpack.c.b16 %v1133, %v1132
        %v1136 = vpack.c.b16 %v1134, %v1134
        %v1155 = vunpack.c.l.b16 %v1108
        %v1156 = vunpack.c.l.b16 %v1109
        %v1157 = vunpack.c.l.b16 %v1110
        %v1158 = vunpack.c.l.b16 %v1111
        %v1159 = vunpack.c.l.b16 %v1112
        %v1160 = vunpack.c.l.b16 %v1113
        %v1161 = vunpack.c.l.b16 %v1114
        %v1162 = vunpack.c.l.b16 %v1115
        %v1163 = vunpack.c.l.b16 %v1116
        %v1164 = vunpack.c.l.b16 %v1117
        %v1165 = vunpack.c.l.b16 %v1118
        %v1166 = vunpack.c.l.b16 %v1119
        %v1167 = vunpack.c.l.b16 %v1120
        %v1168 = vunpack.c.l.b16 %v1121
        %v1169 = vunpack.c.l.b16 %v1122
        %v1170 = vunpack.c.l.b16 %v1123
        %v1171 = vpack.c.b16 %v1156, %v1155
        %v1172 = vpack.c.b16 %v1158, %v1157
        %v1173 = vpack.c.b16 %v1160, %v1159
        %v1174 = vpack.c.b16 %v1162, %v1161
        %v1175 = vpack.c.b16 %v1164, %v1163
        %v1176 = vpack.c.b16 %v1166, %v1165
        %v1177 = vpack.c.b16 %v1168, %v1167
        %v1178 = vpack.c.b16 %v1170, %v1169
        %1187 = vmatpush.bf16.msra.mxu0 %v1178
        %1188 = vmatpush.bf16.msra.mxu0 %v1177
        %1189 = vmatpush.bf16.msra.mxu0 %v1176
        %1190 = vmatpush.bf16.msra.mxu0 %v1175
        %1191 = vmatpush.bf16.msra.mxu0 %v1174
        %1192 = vmatpush.bf16.msra.mxu0 %v1173
        %1193 = vmatpush.bf16.msra.mxu0 %v1172
        %1194 = vmatpush.bf16.msra.mxu0 %v1171
        %1195 = vmatmul.bf16.gmra.mxu0 %v1135
        %v1196 = vpop.f32.mrf.mxu0
        %v1197 = vadd.f32 %v1127, %v1196
        %v1198 = vpop.f32.mrf.mxu0
        %v1199 = vadd.f32 %v1127, %v1198
        %1200 = vmatmul.bf16.gmra.mxu0 %v1136
        %v1201 = vpop.f32.mrf.mxu0
        %v1202 = vadd.f32 %v1127, %v1201
        %v1203 = vpop.f32.mrf.mxu0
        %1204 = vdwg.mxu0
        %1205 = vst [vmem:[#allocation5] sm:$0xff] %v1197
        %1206 = vst [vmem:[#allocation5 + $0x8] sm:$0xff] %v1199
        %1207 = vst [vmem:[#allocation5 + $0x10] sm:$0xff] %v1202
        %s1208 = scalar_lea.vmem [#allocation11], 128
        %v1209 = vld [vmem:[%s1208] sm:$0xf]
        %v1210 = vld [vmem:[%s1208 + $0x4] sm:$0xf]
        %v1211 = vld [vmem:[%s1208 + $0x8] sm:$0xf]
        %v1212 = vld [vmem:[%s1208 + $0xc] sm:$0xf]
        %v1213 = vld [vmem:[%s1208 + $0x10] sm:$0xf]
        %v1214 = vld [vmem:[%s1208 + $0x14] sm:$0xf]
        %v1215 = vld [vmem:[%s1208 + $0x18] sm:$0xf]
        %v1216 = vld [vmem:[%s1208 + $0x1c] sm:$0xf]
        %v1217 = vld [vmem:[%s1208 + $0x20] sm:$0xf]
        %v1218 = vld [vmem:[%s1208 + $0x24] sm:$0xf]
        %v1219 = vld [vmem:[%s1208 + $0x28] sm:$0xf]
        %v1220 = vld [vmem:[%s1208 + $0x2c] sm:$0xf]
        %v1221 = vld [vmem:[%s1208 + $0x30] sm:$0xf]
        %v1222 = vld [vmem:[%s1208 + $0x34] sm:$0xf]
        %v1223 = vld [vmem:[%s1208 + $0x38] sm:$0xf]
        %v1224 = vld [vmem:[%s1208 + $0x3c] sm:$0xf]
        %s1225 = scalar_lea.vmem [#allocation2], 16
        %v1226 = vld [vmem:[%s1225] sm:$0xff]
        %s1227 = scalar_lea.vmem [#allocation3], 16
        %v1228 = vld [vmem:[%s1227] sm:$0xff]
        %v1229 = vld [vmem:[#allocation5] sm:$0xff]
        %v1230 = vpack.c.bf16 %v1226, %v1226
        %v1247 = vunpack.c.l.b16 %v1209
        %v1248 = vunpack.c.l.b16 %v1210
        %v1249 = vunpack.c.l.b16 %v1211
        %v1250 = vunpack.c.l.b16 %v1212
        %v1251 = vunpack.c.l.b16 %v1213
        %v1252 = vunpack.c.l.b16 %v1214
        %v1253 = vunpack.c.l.b16 %v1215
        %v1254 = vunpack.c.l.b16 %v1216
        %v1255 = vunpack.c.l.b16 %v1217
        %v1256 = vunpack.c.l.b16 %v1218
        %v1257 = vunpack.c.l.b16 %v1219
        %v1258 = vunpack.c.l.b16 %v1220
        %v1259 = vunpack.c.l.b16 %v1221
        %v1260 = vunpack.c.l.b16 %v1222
        %v1261 = vunpack.c.l.b16 %v1223
        %v1262 = vunpack.c.l.b16 %v1224
        %v1263 = vpack.c.b16 %v1248, %v1247
        %v1264 = vpack.c.b16 %v1250, %v1249
        %v1265 = vpack.c.b16 %v1252, %v1251
        %v1266 = vpack.c.b16 %v1254, %v1253
        %v1267 = vpack.c.b16 %v1256, %v1255
        %v1268 = vpack.c.b16 %v1258, %v1257
        %v1269 = vpack.c.b16 %v1260, %v1259
        %v1270 = vpack.c.b16 %v1262, %v1261
        %1279 = vmatpush.bf16.msra.mxu0 %v1270
        %1280 = vmatpush.bf16.msra.mxu0 %v1269
        %1281 = vmatpush.bf16.msra.mxu0 %v1268
        %1282 = vmatpush.bf16.msra.mxu0 %v1267
        %1283 = vmatpush.bf16.msra.mxu0 %v1266
        %1284 = vmatpush.bf16.msra.mxu0 %v1265
        %1285 = vmatpush.bf16.msra.mxu0 %v1264
        %1286 = vmatpush.bf16.msra.mxu0 %v1263
        %1287 = vmatmul.bf16.gmra.mxu0 %v1230
        %v1288 = vpop.f32.mrf.mxu0
        %v1289 = vadd.f32 0.0, %v1288
        %v1290 = vpop.f32.mrf.mxu0
        %1291 = vdwg.mxu0
        %v1292 = vadd.f32 %v1229, %v1289
        %v1293 = vtanh.pop %v1292
        %v1294 = vxor.u32 %v1292, 2147483648
        %v1295 = vmul.f32 %v1294, 1.442695
        %v1296 = vpow.pop %v1295
        %v1297 = vadd.f32 %v1296, 1.0
        %v1298 = vrcp.pop %v1297
        %v1299 = vmul.f32 %v1297, %v1298
        %v1300 = vsub.f32 1.0, %v1299
        %v1301 = vmul.f32 %v1298, %v1300
        %v1302 = vadd.f32 %v1298, %v1301
        %vm1303 = vweird.f32 %v1297
        %vm1304 = vweird.f32 %v1298
        %vm1305 = vmor %vm1303, %vm1304
        %v1306 = vsel %vm1305, %v1298, %v1302
        %v1307 = vand.u32 2147483647, %v1297
        %vm1308 = vcmp.eq.f32.partialorder %v1307, 8.507059e+37
        %v1309 = vand.u32 %v1297, 2147483648
        %v1310 = vor.u32 1.1754944e-38, %v1309
        %v1311 = vsel %vm1308, %v1310, %v1306
        %v1312 = vmul.f32 1.0, %v1311
        %v1313 = vsel %vm431, %v1293, %v1312
        %1314 = vrot.lane.b32.xlu0 %v1313, 96
        %v1315 = vpop.permute.xlu0 %1314
        %1316 = vrot.lane.b32.xlu0 %v1313, 64
        %v1317 = vpop.permute.xlu0 %1316
        %1318 = vrot.lane.b32.xlu0 %v1313, 32
        %v1319 = vpop.permute.xlu0 %1318
        %v1320 = vmul.f32 %v1315, %v1228
        %v1321 = vmul.f32 %v1313, %v1317
        %v1322 = vadd.f32 %v1320, %v1321
        %v1323 = vtanh.pop %v1322
        %v1324 = vmul.f32 %v1319, %v1323
        %v1325 = vsel %vm652, %v1324, %v1226
        %v1326 = vsel %vm652, %v1322, %v1228
        %v1327 = vpack.c.bf16 %v1325, %v1325
        %1328 = vst [vmem:[#allocation4] sm:$0xf] %v1327
        %v1329 = vld [vmem:[%s657] sm:$0xff]
        %1330 = vmatpush.bf16.msra.mxu0 %v1270
        %1331 = vmatpush.bf16.msra.mxu0 %v1269
        %1332 = vmatpush.bf16.msra.mxu0 %v1268
        %1333 = vmatpush.bf16.msra.mxu0 %v1267
        %1334 = vmatpush.bf16.msra.mxu0 %v1266
        %1335 = vmatpush.bf16.msra.mxu0 %v1265
        %1336 = vmatpush.bf16.msra.mxu0 %v1264
        %1337 = vmatpush.bf16.msra.mxu0 %v1263
        %1338 = vmatmul.bf16.gmra.mxu0 %v1327
        %v1339 = vpop.f32.mrf.mxu0
        %v1340 = vadd.f32 0.0, %v1339
        %v1341 = vpop.f32.mrf.mxu0
        %1342 = vdwg.mxu0
        %v1343 = vadd.f32 %v1329, %v1340
        %v1344 = vtanh.pop %v1343
        %v1345 = vxor.u32 %v1343, 2147483648
        %v1346 = vmul.f32 %v1345, 1.442695
        %v1347 = vpow.pop %v1346
        %v1348 = vadd.f32 %v1347, 1.0
        %v1349 = vrcp.pop %v1348
        %v1350 = vmul.f32 %v1348, %v1349
        %v1351 = vsub.f32 1.0, %v1350
        %v1352 = vmul.f32 %v1349, %v1351
        %v1353 = vadd.f32 %v1349, %v1352
        %vm1354 = vweird.f32 %v1348
        %vm1355 = vweird.f32 %v1349
        %vm1356 = vmor %vm1354, %vm1355
        %v1357 = vsel %vm1356, %v1349, %v1353
        %v1358 = vand.u32 2147483647, %v1348
        %vm1359 = vcmp.eq.f32.partialorder %v1358, 8.507059e+37
        %v1360 = vand.u32 %v1348, 2147483648
        %v1361 = vor.u32 1.1754944e-38, %v1360
        %v1362 = vsel %vm1359, %v1361, %v1357
        %v1363 = vmul.f32 1.0, %v1362
        %v1364 = vsel %vm431, %v1344, %v1363
        %1365 = vrot.lane.b32.xlu0 %v1364, 96
        %v1366 = vpop.permute.xlu0 %1365
        %1367 = vrot.lane.b32.xlu0 %v1364, 64
        %v1368 = vpop.permute.xlu0 %1367
        %1369 = vrot.lane.b32.xlu0 %v1364, 32
        %v1370 = vpop.permute.xlu0 %1369
        %v1371 = vmul.f32 %v1366, %v1326
        %v1372 = vmul.f32 %v1364, %v1368
        %v1373 = vadd.f32 %v1371, %v1372
        %v1374 = vtanh.pop %v1373
        %v1375 = vmul.f32 %v1370, %v1374
        %v1376 = vsel %vm709, %v1375, %v1325
        %v1377 = vsel %vm709, %v1373, %v1326
        %v1378 = vpack.c.bf16 %v1376, %v1376
        %1379 = vst [vmem:[%s713] sm:$0xf] %v1378
        %v1380 = vld [vmem:[%s715] sm:$0xff]
        %1381 = vmatpush.bf16.msra.mxu0 %v1270
        %1382 = vmatpush.bf16.msra.mxu0 %v1269
        %1383 = vmatpush.bf16.msra.mxu0 %v1268
        %1384 = vmatpush.bf16.msra.mxu0 %v1267
        %1385 = vmatpush.bf16.msra.mxu0 %v1266
        %1386 = vmatpush.bf16.msra.mxu0 %v1265
        %1387 = vmatpush.bf16.msra.mxu0 %v1264
        %1388 = vmatpush.bf16.msra.mxu0 %v1263
        %1389 = vmatmul.bf16.gmra.mxu0 %v1378
        %v1390 = vpop.f32.mrf.mxu0
        %v1391 = vadd.f32 0.0, %v1390
        %v1392 = vpop.f32.mrf.mxu0
        %1393 = vdwg.mxu0
        %v1394 = vadd.f32 %v1380, %v1391
        %v1395 = vtanh.pop %v1394
        %v1396 = vxor.u32 %v1394, 2147483648
        %v1397 = vmul.f32 %v1396, 1.442695
        %v1398 = vpow.pop %v1397
        %v1399 = vadd.f32 %v1398, 1.0
        %v1400 = vrcp.pop %v1399
        %v1401 = vmul.f32 %v1399, %v1400
        %v1402 = vsub.f32 1.0, %v1401
        %v1403 = vmul.f32 %v1400, %v1402
        %v1404 = vadd.f32 %v1400, %v1403
        %vm1405 = vweird.f32 %v1399
        %vm1406 = vweird.f32 %v1400
        %vm1407 = vmor %vm1405, %vm1406
        %v1408 = vsel %vm1407, %v1400, %v1404
        %v1409 = vand.u32 2147483647, %v1399
        %vm1410 = vcmp.eq.f32.partialorder %v1409, 8.507059e+37
        %v1411 = vand.u32 %v1399, 2147483648
        %v1412 = vor.u32 1.1754944e-38, %v1411
        %v1413 = vsel %vm1410, %v1412, %v1408
        %v1414 = vmul.f32 1.0, %v1413
        %v1415 = vsel %vm431, %v1395, %v1414
        %1416 = vrot.lane.b32.xlu0 %v1415, 96
        %v1417 = vpop.permute.xlu0 %1416
        %1418 = vrot.lane.b32.xlu0 %v1415, 64
        %v1419 = vpop.permute.xlu0 %1418
        %1420 = vrot.lane.b32.xlu0 %v1415, 32
        %v1421 = vpop.permute.xlu0 %1420
        %v1422 = vmul.f32 %v1417, %v1377
        %v1423 = vmul.f32 %v1415, %v1419
        %v1424 = vadd.f32 %v1422, %v1423
        %v1425 = vtanh.pop %v1424
        %v1426 = vmul.f32 %v1421, %v1425
        %v1427 = vsel %vm767, %v1426, %v1376
        %v1428 = vsel %vm767, %v1424, %v1377
        %v1429 = vpack.c.bf16 %v1427, %v1427
        %1430 = vst [vmem:[%s771] sm:$0xf] %v1429
        %1431 = vst [vmem:[%s1225] sm:$0xff] %v1427
        %1432 = vst [vmem:[%s1227] sm:$0xff] %v1428
        %v1433 = vld [vmem:[#allocation4] sm:$0xf]
        %v1434 = vld [vmem:[#allocation4 + $0x4] sm:$0xf]
        %v1435 = vld [vmem:[#allocation4 + $0x8] sm:$0xf]
        %s1436 = scalar_lea.vmem [#allocation9], 192
        %v1437 = vld [vmem:[%s1436] sm:$0xf]
        %v1438 = vld [vmem:[%s1436 + $0x4] sm:$0xf]
        %v1439 = vld [vmem:[%s1436 + $0x8] sm:$0xf]
        %v1440 = vld [vmem:[%s1436 + $0xc] sm:$0xf]
        %v1441 = vld [vmem:[%s1436 + $0x10] sm:$0xf]
        %v1442 = vld [vmem:[%s1436 + $0x14] sm:$0xf]
        %v1443 = vld [vmem:[%s1436 + $0x18] sm:$0xf]
        %v1444 = vld [vmem:[%s1436 + $0x1c] sm:$0xf]
        %v1445 = vld [vmem:[%s1436 + $0x20] sm:$0xf]
        %v1446 = vld [vmem:[%s1436 + $0x24] sm:$0xf]
        %v1447 = vld [vmem:[%s1436 + $0x28] sm:$0xf]
        %v1448 = vld [vmem:[%s1436 + $0x2c] sm:$0xf]
        %v1449 = vld [vmem:[%s1436 + $0x30] sm:$0xf]
        %v1450 = vld [vmem:[%s1436 + $0x34] sm:$0xf]
        %v1451 = vld [vmem:[%s1436 + $0x38] sm:$0xf]
        %v1452 = vld [vmem:[%s1436 + $0x3c] sm:$0xf]
        %s1453 = scalar_lea.vmem [#allocation12], 3
        %v1454 = vld [vmem:[%s1453] sm:$0x1]
        %v1456 = vperm.slane %v1454, 0
        %v1461 = vunpack.c.l.b16 %v1433
        %v1462 = vunpack.c.l.b16 %v1434
        %v1463 = vunpack.c.l.b16 %v1435
        %v1464 = vpack.c.b16 %v1462, %v1461
        %v1465 = vpack.c.b16 %v1463, %v1463
        %v1484 = vunpack.c.l.b16 %v1437
        %v1485 = vunpack.c.l.b16 %v1438
        %v1486 = vunpack.c.l.b16 %v1439
        %v1487 = vunpack.c.l.b16 %v1440
        %v1488 = vunpack.c.l.b16 %v1441
        %v1489 = vunpack.c.l.b16 %v1442
        %v1490 = vunpack.c.l.b16 %v1443
        %v1491 = vunpack.c.l.b16 %v1444
        %v1492 = vunpack.c.l.b16 %v1445
        %v1493 = vunpack.c.l.b16 %v1446
        %v1494 = vunpack.c.l.b16 %v1447
        %v1495 = vunpack.c.l.b16 %v1448
        %v1496 = vunpack.c.l.b16 %v1449
        %v1497 = vunpack.c.l.b16 %v1450
        %v1498 = vunpack.c.l.b16 %v1451
        %v1499 = vunpack.c.l.b16 %v1452
        %v1500 = vpack.c.b16 %v1485, %v1484
        %v1501 = vpack.c.b16 %v1487, %v1486
        %v1502 = vpack.c.b16 %v1489, %v1488
        %v1503 = vpack.c.b16 %v1491, %v1490
        %v1504 = vpack.c.b16 %v1493, %v1492
        %v1505 = vpack.c.b16 %v1495, %v1494
        %v1506 = vpack.c.b16 %v1497, %v1496
        %v1507 = vpack.c.b16 %v1499, %v1498
        %1516 = vmatpush.bf16.msra.mxu0 %v1507
        %1517 = vmatpush.bf16.msra.mxu0 %v1506
        %1518 = vmatpush.bf16.msra.mxu0 %v1505
        %1519 = vmatpush.bf16.msra.mxu0 %v1504
        %1520 = vmatpush.bf16.msra.mxu0 %v1503
        %1521 = vmatpush.bf16.msra.mxu0 %v1502
        %1522 = vmatpush.bf16.msra.mxu0 %v1501
        %1523 = vmatpush.bf16.msra.mxu0 %v1500
        %1524 = vmatmul.bf16.gmra.mxu0 %v1464
        %v1525 = vpop.f32.mrf.mxu0
        %v1526 = vadd.f32 %v1456, %v1525
        %v1527 = vpop.f32.mrf.mxu0
        %v1528 = vadd.f32 %v1456, %v1527
        %1529 = vmatmul.bf16.gmra.mxu0 %v1465
        %v1530 = vpop.f32.mrf.mxu0
        %v1531 = vadd.f32 %v1456, %v1530
        %v1532 = vpop.f32.mrf.mxu0
        %1533 = vdwg.mxu0
        %1534 = vst [vmem:[#allocation5] sm:$0xff] %v1526
        %1535 = vst [vmem:[#allocation5 + $0x8] sm:$0xff] %v1528
        %1536 = vst [vmem:[#allocation5 + $0x10] sm:$0xff] %v1531
        %s1537 = scalar_lea.vmem [#allocation11], 192
        %v1538 = vld [vmem:[%s1537] sm:$0xf]
        %v1539 = vld [vmem:[%s1537 + $0x4] sm:$0xf]
        %v1540 = vld [vmem:[%s1537 + $0x8] sm:$0xf]
        %v1541 = vld [vmem:[%s1537 + $0xc] sm:$0xf]
        %v1542 = vld [vmem:[%s1537 + $0x10] sm:$0xf]
        %v1543 = vld [vmem:[%s1537 + $0x14] sm:$0xf]
        %v1544 = vld [vmem:[%s1537 + $0x18] sm:$0xf]
        %v1545 = vld [vmem:[%s1537 + $0x1c] sm:$0xf]
        %v1546 = vld [vmem:[%s1537 + $0x20] sm:$0xf]
        %v1547 = vld [vmem:[%s1537 + $0x24] sm:$0xf]
        %v1548 = vld [vmem:[%s1537 + $0x28] sm:$0xf]
        %v1549 = vld [vmem:[%s1537 + $0x2c] sm:$0xf]
        %v1550 = vld [vmem:[%s1537 + $0x30] sm:$0xf]
        %v1551 = vld [vmem:[%s1537 + $0x34] sm:$0xf]
        %v1552 = vld [vmem:[%s1537 + $0x38] sm:$0xf]
        %v1553 = vld [vmem:[%s1537 + $0x3c] sm:$0xf]
        %s1554 = scalar_lea.vmem [#allocation2], 24
        %v1555 = vld [vmem:[%s1554] sm:$0xff]
        %s1556 = scalar_lea.vmem [#allocation3], 24
        %v1557 = vld [vmem:[%s1556] sm:$0xff]
        %v1558 = vld [vmem:[#allocation5] sm:$0xff]
        %v1559 = vpack.c.bf16 %v1555, %v1555
        %v1576 = vunpack.c.l.b16 %v1538
        %v1577 = vunpack.c.l.b16 %v1539
        %v1578 = vunpack.c.l.b16 %v1540
        %v1579 = vunpack.c.l.b16 %v1541
        %v1580 = vunpack.c.l.b16 %v1542
        %v1581 = vunpack.c.l.b16 %v1543
        %v1582 = vunpack.c.l.b16 %v1544
        %v1583 = vunpack.c.l.b16 %v1545
        %v1584 = vunpack.c.l.b16 %v1546
        %v1585 = vunpack.c.l.b16 %v1547
        %v1586 = vunpack.c.l.b16 %v1548
        %v1587 = vunpack.c.l.b16 %v1549
        %v1588 = vunpack.c.l.b16 %v1550
        %v1589 = vunpack.c.l.b16 %v1551
        %v1590 = vunpack.c.l.b16 %v1552
        %v1591 = vunpack.c.l.b16 %v1553
        %v1592 = vpack.c.b16 %v1577, %v1576
        %v1593 = vpack.c.b16 %v1579, %v1578
        %v1594 = vpack.c.b16 %v1581, %v1580
        %v1595 = vpack.c.b16 %v1583, %v1582
        %v1596 = vpack.c.b16 %v1585, %v1584
        %v1597 = vpack.c.b16 %v1587, %v1586
        %v1598 = vpack.c.b16 %v1589, %v1588
        %v1599 = vpack.c.b16 %v1591, %v1590
        %1608 = vmatpush.bf16.msra.mxu0 %v1599
        %1609 = vmatpush.bf16.msra.mxu0 %v1598
        %1610 = vmatpush.bf16.msra.mxu0 %v1597
        %1611 = vmatpush.bf16.msra.mxu0 %v1596
        %1612 = vmatpush.bf16.msra.mxu0 %v1595
        %1613 = vmatpush.bf16.msra.mxu0 %v1594
        %1614 = vmatpush.bf16.msra.mxu0 %v1593
        %1615 = vmatpush.bf16.msra.mxu0 %v1592
        %1616 = vmatmul.bf16.gmra.mxu0 %v1559
        %v1617 = vpop.f32.mrf.mxu0
        %v1618 = vadd.f32 0.0, %v1617
        %v1619 = vpop.f32.mrf.mxu0
        %1620 = vdwg.mxu0
        %v1621 = vadd.f32 %v1558, %v1618
        %v1622 = vtanh.pop %v1621
        %v1623 = vxor.u32 %v1621, 2147483648
        %v1624 = vmul.f32 %v1623, 1.442695
        %v1625 = vpow.pop %v1624
        %v1626 = vadd.f32 %v1625, 1.0
        %v1627 = vrcp.pop %v1626
        %v1628 = vmul.f32 %v1626, %v1627
        %v1629 = vsub.f32 1.0, %v1628
        %v1630 = vmul.f32 %v1627, %v1629
        %v1631 = vadd.f32 %v1627, %v1630
        %vm1632 = vweird.f32 %v1626
        %vm1633 = vweird.f32 %v1627
        %vm1634 = vmor %vm1632, %vm1633
        %v1635 = vsel %vm1634, %v1627, %v1631
        %v1636 = vand.u32 2147483647, %v1626
        %vm1637 = vcmp.eq.f32.partialorder %v1636, 8.507059e+37
        %v1638 = vand.u32 %v1626, 2147483648
        %v1639 = vor.u32 1.1754944e-38, %v1638
        %v1640 = vsel %vm1637, %v1639, %v1635
        %v1641 = vmul.f32 1.0, %v1640
        %v1642 = vsel %vm431, %v1622, %v1641
        %1643 = vrot.lane.b32.xlu0 %v1642, 96
        %v1644 = vpop.permute.xlu0 %1643
        %1645 = vrot.lane.b32.xlu0 %v1642, 64
        %v1646 = vpop.permute.xlu0 %1645
        %1647 = vrot.lane.b32.xlu0 %v1642, 32
        %v1648 = vpop.permute.xlu0 %1647
        %v1649 = vmul.f32 %v1644, %v1557
        %v1650 = vmul.f32 %v1642, %v1646
        %v1651 = vadd.f32 %v1649, %v1650
        %v1652 = vtanh.pop %v1651
        %v1653 = vmul.f32 %v1648, %v1652
        %v1654 = vsel %vm652, %v1653, %v1555
        %v1655 = vsel %vm652, %v1651, %v1557
        %v1656 = vpack.c.bf16 %v1654, %v1654
        %1657 = vst [vmem:[#allocation4] sm:$0xf] %v1656
        %v1658 = vld [vmem:[%s657] sm:$0xff]
        %1659 = vmatpush.bf16.msra.mxu0 %v1599
        %1660 = vmatpush.bf16.msra.mxu0 %v1598
        %1661 = vmatpush.bf16.msra.mxu0 %v1597
        %1662 = vmatpush.bf16.msra.mxu0 %v1596
        %1663 = vmatpush.bf16.msra.mxu0 %v1595
        %1664 = vmatpush.bf16.msra.mxu0 %v1594
        %1665 = vmatpush.bf16.msra.mxu0 %v1593
        %1666 = vmatpush.bf16.msra.mxu0 %v1592
        %1667 = vmatmul.bf16.gmra.mxu0 %v1656
        %v1668 = vpop.f32.mrf.mxu0
        %v1669 = vadd.f32 0.0, %v1668
        %v1670 = vpop.f32.mrf.mxu0
        %1671 = vdwg.mxu0
        %v1672 = vadd.f32 %v1658, %v1669
        %v1673 = vtanh.pop %v1672
        %v1674 = vxor.u32 %v1672, 2147483648
        %v1675 = vmul.f32 %v1674, 1.442695
        %v1676 = vpow.pop %v1675
        %v1677 = vadd.f32 %v1676, 1.0
        %v1678 = vrcp.pop %v1677
        %v1679 = vmul.f32 %v1677, %v1678
        %v1680 = vsub.f32 1.0, %v1679
        %v1681 = vmul.f32 %v1678, %v1680
        %v1682 = vadd.f32 %v1678, %v1681
        %vm1683 = vweird.f32 %v1677
        %vm1684 = vweird.f32 %v1678
        %vm1685 = vmor %vm1683, %vm1684
        %v1686 = vsel %vm1685, %v1678, %v1682
        %v1687 = vand.u32 2147483647, %v1677
        %vm1688 = vcmp.eq.f32.partialorder %v1687, 8.507059e+37
        %v1689 = vand.u32 %v1677, 2147483648
        %v1690 = vor.u32 1.1754944e-38, %v1689
        %v1691 = vsel %vm1688, %v1690, %v1686
        %v1692 = vmul.f32 1.0, %v1691
        %v1693 = vsel %vm431, %v1673, %v1692
        %1694 = vrot.lane.b32.xlu0 %v1693, 96
        %v1695 = vpop.permute.xlu0 %1694
        %1696 = vrot.lane.b32.xlu0 %v1693, 64
        %v1697 = vpop.permute.xlu0 %1696
        %1698 = vrot.lane.b32.xlu0 %v1693, 32
        %v1699 = vpop.permute.xlu0 %1698
        %v1700 = vmul.f32 %v1695, %v1655
        %v1701 = vmul.f32 %v1693, %v1697
        %v1702 = vadd.f32 %v1700, %v1701
        %v1703 = vtanh.pop %v1702
        %v1704 = vmul.f32 %v1699, %v1703
        %v1705 = vsel %vm709, %v1704, %v1654
        %v1706 = vsel %vm709, %v1702, %v1655
        %v1707 = vpack.c.bf16 %v1705, %v1705
        %1708 = vst [vmem:[%s713] sm:$0xf] %v1707
        %v1709 = vld [vmem:[%s715] sm:$0xff]
        %1710 = vmatpush.bf16.msra.mxu0 %v1599
        %1711 = vmatpush.bf16.msra.mxu0 %v1598
        %1712 = vmatpush.bf16.msra.mxu0 %v1597
        %1713 = vmatpush.bf16.msra.mxu0 %v1596
        %1714 = vmatpush.bf16.msra.mxu0 %v1595
        %1715 = vmatpush.bf16.msra.mxu0 %v1594
        %1716 = vmatpush.bf16.msra.mxu0 %v1593
        %1717 = vmatpush.bf16.msra.mxu0 %v1592
        %1718 = vmatmul.bf16.gmra.mxu0 %v1707
        %v1719 = vpop.f32.mrf.mxu0
        %v1720 = vadd.f32 0.0, %v1719
        %v1721 = vpop.f32.mrf.mxu0
        %1722 = vdwg.mxu0
        %v1723 = vadd.f32 %v1709, %v1720
        %v1724 = vtanh.pop %v1723
        %v1725 = vxor.u32 %v1723, 2147483648
        %v1726 = vmul.f32 %v1725, 1.442695
        %v1727 = vpow.pop %v1726
        %v1728 = vadd.f32 %v1727, 1.0
        %v1729 = vrcp.pop %v1728
        %v1730 = vmul.f32 %v1728, %v1729
        %v1731 = vsub.f32 1.0, %v1730
        %v1732 = vmul.f32 %v1729, %v1731
        %v1733 = vadd.f32 %v1729, %v1732
        %vm1734 = vweird.f32 %v1728
        %vm1735 = vweird.f32 %v1729
        %vm1736 = vmor %vm1734, %vm1735
        %v1737 = vsel %vm1736, %v1729, %v1733
        %v1738 = vand.u32 2147483647, %v1728
        %vm1739 = vcmp.eq.f32.partialorder %v1738, 8.507059e+37
        %v1740 = vand.u32 %v1728, 2147483648
        %v1741 = vor.u32 1.1754944e-38, %v1740
        %v1742 = vsel %vm1739, %v1741, %v1737
        %v1743 = vmul.f32 1.0, %v1742
        %v1744 = vsel %vm431, %v1724, %v1743
        %1745 = vrot.lane.b32.xlu0 %v1744, 96
        %v1746 = vpop.permute.xlu0 %1745
        %1747 = vrot.lane.b32.xlu0 %v1744, 64
        %v1748 = vpop.permute.xlu0 %1747
        %1749 = vrot.lane.b32.xlu0 %v1744, 32
        %v1750 = vpop.permute.xlu0 %1749
        %v1751 = vmul.f32 %v1746, %v1706
        %v1752 = vmul.f32 %v1744, %v1748
        %v1753 = vadd.f32 %v1751, %v1752
        %v1754 = vtanh.pop %v1753
        %v1755 = vmul.f32 %v1750, %v1754
        %v1756 = vsel %vm767, %v1755, %v1705
        %v1757 = vsel %vm767, %v1753, %v1706
        %v1758 = vpack.c.bf16 %v1756, %v1756
        %1759 = vst [vmem:[%s771] sm:$0xf] %v1758
        %1760 = vst [vmem:[%s1554] sm:$0xff] %v1756
        %1761 = vst [vmem:[%s1556] sm:$0xff] %v1757
        %v1762 = vld [vmem:[#allocation4] sm:$0xf]
        %v1763 = vld [vmem:[#allocation4 + $0x4] sm:$0xf]
        %v1764 = vld [vmem:[#allocation4 + $0x8] sm:$0xf]
        %1765 = vst [vmem:[%s400] sm:$0xf] %v1762
        %1766 = vst [vmem:[%s400 + $0x4] sm:$0xf] %v1763
        %1767 = vst [vmem:[%s400 + $0x8] sm:$0xf] %v1764
        %v1768 = vld [vmem:[#allocation2] sm:$0xff]
        %v1769 = vld [vmem:[#allocation2 + $0x8] sm:$0xff]
        %v1770 = vld [vmem:[#allocation2 + $0x10] sm:$0xff]
        %v1771 = vld [vmem:[#allocation2 + $0x18] sm:$0xff]
        %1772 = vst [vmem:[#allocation18] sm:$0xff] %v1768
        %1773 = vst [vmem:[#allocation18 + $0x8] sm:$0xff] %v1769
        %1774 = vst [vmem:[#allocation18 + $0x10] sm:$0xff] %v1770
        %1775 = vst [vmem:[#allocation18 + $0x18] sm:$0xff] %v1771
        %v1776 = vld [vmem:[#allocation3] sm:$0xff]
        %v1777 = vld [vmem:[#allocation3 + $0x8] sm:$0xff]
        %v1778 = vld [vmem:[#allocation3 + $0x10] sm:$0xff]
        %v1779 = vld [vmem:[#allocation3 + $0x18] sm:$0xff]
        %1780 = vst [vmem:[#allocation20] sm:$0xff] %v1776
        %1781 = vst [vmem:[#allocation20 + $0x8] sm:$0xff] %v1777
        %1782 = vst [vmem:[#allocation20 + $0x10] sm:$0xff] %v1778
        %1783 = vst [vmem:[#allocation20 + $0x18] sm:$0xff] %v1779
        %s1784 = sand.u32 %s169, 1
        %s1785 = scalar_lea.sflag [#allocation8], %s1784
        %s1786 = sand.u32 %s169, 1
        %s1787 = smul.addr %s1786, 12
        %s1788 = scalar_lea.vmem [#allocation17], %s1787
        // Predicated region
        $region73: #{tpu_custom_call.1} parent=43 // pred_check
          %p1789 = pneg %p179
        $region74: #{tpu_custom_call.1} parent=43 // pred_check_branch
          %1791 = sbr.rel (%p1789) target = $region76
        $region75: #{tpu_custom_call.1} parent=43 // pred_region
          %s1792 = smul.u32 3, %s30
          %1794 = vsyncadd %s1785, 0
          %s1795 = smul.addr %s1792, 4
          %s1796 = scalar_lea.hbm %s6, %s1795
          %s1797 = sshll.u32 %s1788, 4
          %s1798 = int_to_ptr.vmem [resolvable:$true] %s1797
          %s1799 = sshll.u32 %s1796, 4
          %s1800 = int_to_ptr.hbm [resolvable:$true] %s1799
          %1805 = dma.vmem_to_hbm [thread:$0]  %s1798, 192, %s1800, %s1785, 64, 64, 4
        $region76: #{tpu_custom_call.1} parent=43 // pred_fallthru
          _
        // Predicated region
        $region77: #{tpu_custom_call.1} parent=43 // pred_check
          %p1806 = pneg %p200
        $region78: #{tpu_custom_call.1} parent=43 // pred_check_branch
          %1808 = sbr.rel (%p1806) target = $region80
        $region79: #{tpu_custom_call.1} parent=43 // pred_region
          %1810 = vsyncadd [#allocation19], 0
          %s1811 = sshll.u32 [#allocation18], 4
          %s1812 = int_to_ptr.vmem [resolvable:$true] %s1811
          %s1813 = sshll.u32 %s7, 4
          %s1814 = int_to_ptr.hbm [resolvable:$true] %s1813
          %1819 = dma.vmem_to_hbm [thread:$0]  %s1812, 512, %s1814, [#allocation19], 128, 128, 8
        $region80: #{tpu_custom_call.1} parent=43 // pred_fallthru
          _
        // Predicated region
        $region81: #{tpu_custom_call.1} parent=43 // pred_check
          %p1820 = pneg %p221
        $region82: #{tpu_custom_call.1} parent=43 // pred_check_branch
          %1822 = sbr.rel (%p1820) target = $region84
        $region83: #{tpu_custom_call.1} parent=43 // pred_region
          %1824 = vsyncadd [#allocation19], 0
          %s1825 = sshll.u32 [#allocation20], 4
          %s1826 = int_to_ptr.vmem [resolvable:$true] %s1825
          %s1827 = sshll.u32 %s8, 4
          %s1828 = int_to_ptr.hbm [resolvable:$true] %s1827
          %1833 = dma.vmem_to_hbm [thread:$0]  %s1826, 512, %s1828, [#allocation19], 128, 128, 8
        $region84: #{tpu_custom_call.1} parent=43 // pred_fallthru
          _
        // Predicated region
        $region85: #{tpu_custom_call.1} parent=43 // pred_check
          %p1834 = pneg %p200
        $region86: #{tpu_custom_call.1} parent=43 // pred_check_branch
          %1836 = sbr.rel (%p1834) target = $region88
        $region87: #{tpu_custom_call.1} parent=43 // pred_region
          %1838 = dma.done [#allocation19], 512
        $region88: #{tpu_custom_call.1} parent=43 // pred_fallthru
          _
        // Predicated region
        $region89: #{tpu_custom_call.1} parent=43 // pred_check
          %p1839 = pneg %p221
        $region90: #{tpu_custom_call.1} parent=43 // pred_check_branch
          %1841 = sbr.rel (%p1839) target = $region92
        $region91: #{tpu_custom_call.1} parent=43 // pred_region
          %1843 = dma.done [#allocation19], 512
        $region92: #{tpu_custom_call.1} parent=43 // pred_fallthru
          _
      $region44: #{tpu_custom_call.1} parent=5 // pred_fallthru
        _
      %p1844 = scmp.le.s32.totalorder 2, %s25
      // Predicated region
      $region93: #{tpu_custom_call.1} parent=5 // pred_check
        %p1845 = pneg %p1844
      $region94: #{tpu_custom_call.1} parent=5 // pred_check_branch
        %1847 = sbr.rel (%p1845) target = $region96
      $region95: #{tpu_custom_call.1} parent=5 // pred_region
        %s1848 = ssub.s32 %s25, 2
        // Predicated region
        $region97: #{tpu_custom_call.1} parent=95 // pred_check
          %p1849 = pneg %p185
        $region98: #{tpu_custom_call.1} parent=95 // pred_check_branch
          %1851 = sbr.rel (%p1849) target = $region100
        $region99: #{tpu_custom_call.1} parent=95 // pred_region
          %s1852 = sand.u32 %s170, 1
          %s1853 = scalar_lea.sflag [#allocation8], %s1852
          %s1854 = sand.u32 %s170, 1
          %s1855 = smul.addr %s1854, 12
          %s1856 = scalar_lea.vmem [#allocation17], %s1855
          %1858 = dma.done %s1853, 192
        $region100: #{tpu_custom_call.1} parent=95 // pred_fallthru
          _
      $region96: #{tpu_custom_call.1} parent=5 // pred_fallthru
        _
    $region6: #{tpu_custom_call.1} parent=1 // loop_footer
      %s29 = sadd.s32 1, %s25
    $region7: #{tpu_custom_call.1} parent=1 // loop_footer_branch
      %24 = sbr.rel target = $region3
    $region8: #{tpu_custom_call.1} parent=1 // loop_exit
      _
    %1859 = vsyncpa [#allocation7], 1
    %s1860 = scalar_lea.sflag [#allocation7], 1
    %1861 = vsyncpa %s1860, 1
    %1862 = vsyncpa [#allocation10], 1
    %1863 = vsyncpa [#allocation13], 1
    %1864 = vsyncpa [#allocation16], 1
    %1865 = vsyncpa [#allocation8], 1
    %s1866 = scalar_lea.sflag [#allocation8], 1
    %1867 = vsyncpa %s1866, 1
    %1868 = vsyncpa [#allocation19], 1

</llo_original>
